<compile_context>
chip_gen: v5e
topology: v5e:2x2
jax: 0.10.0
libtpu: 0.0.40
codegen_flags: <defaults>
</compile_context>

<pallas_src>
import functools

import jax
import jax.numpy as jnp
from jax import lax
from jax.experimental import pallas as pl
from jax.experimental.pallas import tpu as pltpu


def _vmem_capacity_bytes():
    try:
        return int(pltpu.get_tpu_info().vmem_capacity_bytes)
    except Exception:
        return 128 << 20  # conservative fallback (v5e/v6e physical VMEM)


# ---------------------------------------------------------------------------
# Shared tile conv: in-kernel im2col via KH*KW static tap slices, one small
# bf16 MXU matmul per tap, f32 accumulation.  Returns (nb*Ho*Wo, Cout) f32.
# ---------------------------------------------------------------------------
def _conv_tile(x, w, *, KH, KW, stride, Ho, Wo):
    nb, Hp, Wp, Cin = x.shape
    Cout = w.shape[-1]
    mt = nb * Ho * Wo
    acc = jnp.zeros((mt, Cout), jnp.float32)
    for kh in range(KH):
        for kw in range(KW):
            tap = x[:, kh:kh + (Ho - 1) * stride + 1:stride,
                       kw:kw + (Wo - 1) * stride + 1:stride, :]      # (nb, Ho, Wo, Cin)
            acc = acc + jnp.dot(tap.reshape(mt, Cin), w[kh * KW + kw],
                                preferred_element_type=jnp.float32)
    return acc


# ---------------------------------------------------------------------------
# Pass 1: per-tile partial BatchNorm statistics (sum, sum of squares).
# Per-tile outputs -> grid axis is fully parallel (megacore-friendly on v7x).
# ---------------------------------------------------------------------------
def _stats_kernel(x_ref, w_ref, sum_ref, sumsq_ref, *, KH, KW, stride, Ho, Wo):
    conv = _conv_tile(x_ref[...], w_ref[...], KH=KH, KW=KW,
                      stride=stride, Ho=Ho, Wo=Wo)
    sum_ref[0] = jnp.sum(conv, axis=0, keepdims=True)            # (1, Cout)
    sumsq_ref[0] = jnp.sum(conv * conv, axis=0, keepdims=True)    # (1, Cout)


# ---------------------------------------------------------------------------
# Pass 2: recompute conv, apply folded BN (y = conv*scale + shift), LeakyReLU.
# ---------------------------------------------------------------------------
def _conv_bn_act_kernel(x_ref, w_ref, scale_ref, shift_ref, o_ref, *,
                        KH, KW, stride, Ho, Wo, neg_slope):
    conv = _conv_tile(x_ref[...], w_ref[...], KH=KH, KW=KW,
                      stride=stride, Ho=Ho, Wo=Wo)
    y = conv * scale_ref[...] + shift_ref[...]                    # broadcast (1, Cout)
    y = jnp.where(y > 0, y, neg_slope * y)
    nb = x_ref.shape[0]
    o_ref[...] = y.reshape(nb, Ho, Wo, -1).astype(o_ref.dtype)


def conv_block_forward(x_nchw, w_hwio, gamma, beta, *, stride=1, pad=1,
                       eps=1e-5, neg_slope=0.2, images_per_tile=None):
    """Conv2d(bias=False) -> BatchNorm2d (training batch stats) -> LeakyReLU."""
    N, Cin, H, W = x_nchw.shape
    KH, KW, Cin_w, Cout = w_hwio.shape
    assert Cin == Cin_w
    Ho = (H + 2 * pad - KH) // stride + 1
    Wo = (W + 2 * pad - KW) // stride + 1
    Hp, Wp = H + 2 * pad, W + 2 * pad
    M = N * Ho * Wo

    # ---- single fused wrapper layout pass: NCHW -> NHWC, spatial pad, bf16 ----
    x_pad = jnp.pad(jnp.transpose(x_nchw, (0, 2, 3, 1)),
                    ((0, 0), (pad, pad), (pad, pad), (0, 0))).astype(jnp.bfloat16)
    w_taps = w_hwio.reshape(KH * KW, Cin, Cout).astype(jnp.bfloat16)

    # ---- tile choice: whole images per grid step ----
    vmem_cap = _vmem_capacity_bytes()

    def tile_vmem_bytes(nb_):
        x_tile = nb_ * Hp * Wp * Cin * 2           # bf16, double-buffered below
        out_tile = nb_ * Ho * Wo * Cout * 4        # f32, double-buffered below
        w_bytes = KH * KW * Cin * Cout * 2
        interm = nb_ * Ho * Wo * (Cout * 4 + Cin * 2)  # f32 acc + one live tap
        return 2 * x_tile + 2 * out_tile + w_bytes + interm

    if images_per_tile is None:
        rows_target = 1024                         # amortize ~0.35us/step; MXU-height friendly
        nb = max(1, min(N, rows_target // max(Ho * Wo, 1)))
    else:
        nb = max(1, min(N, int(images_per_tile)))
    while nb > 1 and tile_vmem_bytes(nb) > vmem_cap // 4:
        nb -= 1

    grid_n = -(-N // nb)
    N_pad = grid_n * nb
    if N_pad != N:
        # Zero-padded images: conv == 0 there -> no effect on sums (divisor is true M).
        x_pad = jnp.pad(x_pad, ((0, N_pad - N), (0, 0), (0, 0), (0, 0)))

    vmem_limit = int(min(max(tile_vmem_bytes(nb) + (8 << 20), 16 << 20),
                         vmem_cap // 2))

    x_spec = pl.BlockSpec((nb, Hp, Wp, Cin), lambda i: (i, 0, 0, 0))
    w_spec = pl.BlockSpec((KH * KW, Cin, Cout), lambda i: (0, 0, 0))

    # ---- pass 1: per-tile partial statistics (no conv intermediate in HBM) ----
    psum, psumsq = pl.pallas_call(
        functools.partial(_stats_kernel, KH=KH, KW=KW, stride=stride, Ho=Ho, Wo=Wo),
        out_shape=(jax.ShapeDtypeStruct((grid_n, 1, Cout), jnp.float32),
                   jax.ShapeDtypeStruct((grid_n, 1, Cout), jnp.float32)),
        grid=(grid_n,),
        in_specs=[x_spec, w_spec],
        out_specs=(pl.BlockSpec((1, 1, Cout), lambda i: (i, 0, 0)),
                   pl.BlockSpec((1, 1, Cout), lambda i: (i, 0, 0))),
        compiler_params=pltpu.CompilerParams(
            dimension_semantics=("parallel",),
            vmem_limit_bytes=vmem_limit),
    )(x_pad, w_taps)

    # ---- fold BatchNorm (biased batch stats, divisor = true M) into scale/shift ----
    inv_m = 1.0 / float(M)
    csum = jnp.sum(psum, axis=0)[0]          # (Cout,) f32
    csumsq = jnp.sum(psumsq, axis=0)[0]
    mean = csum * inv_m
    var = jnp.maximum(csumsq * inv_m - mean * mean, 0.0)
    inv = lax.rsqrt(var + eps)
    g = gamma.astype(jnp.float32)
    b = beta.astype(jnp.float32)
    scale = (g * inv).reshape(1, Cout)
    shift = (b - mean * g * inv).reshape(1, Cout)

    # ---- pass 2: recompute conv + BN + LeakyReLU, fully parallel over tiles ----
    out_nhwc = pl.pallas_call(
        functools.partial(_conv_bn_act_kernel, KH=KH, KW=KW, stride=stride,
                          Ho=Ho, Wo=Wo, neg_slope=neg_slope),
        out_shape=jax.ShapeDtypeStruct((N_pad, Ho, Wo, Cout), jnp.float32),
        grid=(grid_n,),
        in_specs=[x_spec, w_spec,
                  pl.BlockSpec((1, Cout), lambda i: (0, 0)),
                  pl.BlockSpec((1, Cout), lambda i: (0, 0))],
        out_specs=pl.BlockSpec((nb, Ho, Wo, Cout), lambda i: (i, 0, 0, 0)),
        compiler_params=pltpu.CompilerParams(
            dimension_semantics=("parallel",),
            vmem_limit_bytes=vmem_limit),
    )(x_pad, w_taps, scale, shift)

    out = out_nhwc[:N]
    # Module contract is NCHW; single small transpose back.
    return jnp.transpose(out, (0, 3, 1, 2)).astype(x_nchw.dtype)


def conv_block_reference(x_nchw, w_hwio, gamma, beta, *, stride=1, pad=1,
                         eps=1e-5, neg_slope=0.2):
    """Pure-JAX reference (lax.conv + batch-norm + leaky relu)."""
    w_oihw = jnp.transpose(w_hwio, (3, 2, 0, 1))
    conv = lax.conv_general_dilated(
        x_nchw.astype(jnp.float32), w_oihw.astype(jnp.float32),
        window_strides=(stride, stride),
        padding=[(pad, pad), (pad, pad)],
        dimension_numbers=("NCHW", "OIHW", "NCHW"))
    mean = jnp.mean(conv, axis=(0, 2, 3), keepdims=True)
    var = jnp.mean((conv - mean) ** 2, axis=(0, 2, 3), keepdims=True)
    y = (conv - mean) * lax.rsqrt(var + eps) * gamma.reshape(1, -1, 1, 1) \
        + beta.reshape(1, -1, 1, 1)
    return jnp.where(y > 0, y, neg_slope * y)


if __name__ == "__main__":
    # Shapes consistent with ConvBlock(c_in=4, c_out=8, nkernel=3, nstride=1,
    # npad=1, transpose=False, leaky=True).
    N, Cin, H, W = 2, 4, 16, 16
    Cout, KH, KW = 8, 3, 3

    key = jax.random.PRNGKey(0)
    kx, kw = jax.random.split(key)
    x = jax.random.normal(kx, (N, Cin, H, W), dtype=jnp.float32)
    w_hwio = 0.1 * jax.random.normal(kw, (KH, KW, Cin, Cout), dtype=jnp.float32)
    # BatchNorm2d affine params, PyTorch default init (weight=1, bias=0).
    gamma = jnp.ones((Cout,), dtype=jnp.float32)
    beta = jnp.zeros((Cout,), dtype=jnp.float32)

    # images_per_tile=1 -> 2 grid steps: exercises multi-tile partial stats and
    # the fully parallel (megacore-shardable) grids.
    out = conv_block_forward(x, w_hwio, gamma, beta, stride=1, pad=1,
                             images_per_tile=1)
    out = jax.block_until_ready(out)

    ref = conv_block_reference(x, w_hwio, gamma, beta, stride=1, pad=1)
    assert out.shape == (N, Cout, H, W), out.shape
    assert jnp.allclose(out, ref, atol=3e-2, rtol=3e-2), \
        float(jnp.max(jnp.abs(out - ref)))

    print("KERNEL_OK")
</pallas_src>

<mosaic_0001>
module attributes {stable_mosaic.version = 11 : i64} {
  func.func @_stats_kernel(%arg0: i32, %arg1: memref<1x18x18x4xbf16, #tpu.memory_space<vmem>>, %arg2: memref<9x4x8xbf16, #tpu.memory_space<vmem>>, %arg3: memref<1x1x8xf32, #tpu.memory_space<vmem>>, %arg4: memref<1x1x8xf32, #tpu.memory_space<vmem>>) attributes {dimension_semantics = [#tpu.dimension_semantics<parallel>], iteration_bounds = array<i64: 2>, scalar_prefetch = 0 : i64, scratch_operands = 0 : i64, tpu.core_type = #tpu.core_type<tc>, window_params = [{transform_indices = @transform_0, window_bounds = array<i64: 1, 18, 18, 4>}, {pipeline_mode = #tpu.pipeline_mode<synchronous>, transform_indices = @transform_1, window_bounds = array<i64: 9, 4, 8>}, {transform_indices = @transform_2, window_bounds = array<i64: 1, 1, 8>}, {transform_indices = @transform_3, window_bounds = array<i64: 1, 1, 8>}]} {
    %c0 = arith.constant 0 : index
    %c0_0 = arith.constant 0 : index
    %c0_1 = arith.constant 0 : index
    %c0_2 = arith.constant 0 : index
    %0 = vector.load %arg1[%c0, %c0_0, %c0_1, %c0_2] : memref<1x18x18x4xbf16, #tpu.memory_space<vmem>>, vector<1x18x18x4xbf16>
    %c0_3 = arith.constant 0 : index
    %c0_4 = arith.constant 0 : index
    %c0_5 = arith.constant 0 : index
    %1 = vector.load %arg2[%c0_3, %c0_4, %c0_5] : memref<9x4x8xbf16, #tpu.memory_space<vmem>>, vector<9x4x8xbf16>
    %cst = arith.constant 0.000000e+00 : f32
    %2 = vector.broadcast %cst : f32 to vector<256x8xf32>
    %3 = vector.extract_strided_slice %0 {offsets = [0, 0, 0, 0], sizes = [1, 16, 16, 4], strides = [1, 1, 1, 1]} : vector<1x18x18x4xbf16> to vector<1x16x16x4xbf16>
    %4 = vector.shape_cast %3 : vector<1x16x16x4xbf16> to vector<256x4xbf16>
    %5 = vector.extract_strided_slice %1 {offsets = [0, 0, 0], sizes = [1, 4, 8], strides = [1, 1, 1]} : vector<9x4x8xbf16> to vector<1x4x8xbf16>
    %6 = vector.shape_cast %5 : vector<1x4x8xbf16> to vector<4x8xbf16>
    %cst_6 = arith.constant dense<0.000000e+00> : vector<256x8xf32>
    %7 = tpu.matmul %4, %6, %cst_6 {dimension_numbers = #tpu.dot_dimension_numbers<[1], [0], [0], [1], [0, 0, 1, 1], [], []>} : vector<256x4xbf16>, vector<4x8xbf16>, vector<256x8xf32> -> vector<256x8xf32>
    %8 = arith.addf %2, %7 : vector<256x8xf32>
    %9 = vector.extract_strided_slice %0 {offsets = [0, 0, 1, 0], sizes = [1, 16, 16, 4], strides = [1, 1, 1, 1]} : vector<1x18x18x4xbf16> to vector<1x16x16x4xbf16>
    %10 = vector.shape_cast %9 : vector<1x16x16x4xbf16> to vector<256x4xbf16>
    %11 = vector.extract_strided_slice %1 {offsets = [1, 0, 0], sizes = [1, 4, 8], strides = [1, 1, 1]} : vector<9x4x8xbf16> to vector<1x4x8xbf16>
    %12 = vector.shape_cast %11 : vector<1x4x8xbf16> to vector<4x8xbf16>
    %cst_7 = arith.constant dense<0.000000e+00> : vector<256x8xf32>
    %13 = tpu.matmul %10, %12, %cst_7 {dimension_numbers = #tpu.dot_dimension_numbers<[1], [0], [0], [1], [0, 0, 1, 1], [], []>} : vector<256x4xbf16>, vector<4x8xbf16>, vector<256x8xf32> -> vector<256x8xf32>
    %14 = arith.addf %8, %13 : vector<256x8xf32>
    %15 = vector.extract_strided_slice %0 {offsets = [0, 0, 2, 0], sizes = [1, 16, 16, 4], strides = [1, 1, 1, 1]} : vector<1x18x18x4xbf16> to vector<1x16x16x4xbf16>
    %16 = vector.shape_cast %15 : vector<1x16x16x4xbf16> to vector<256x4xbf16>
    %17 = vector.extract_strided_slice %1 {offsets = [2, 0, 0], sizes = [1, 4, 8], strides = [1, 1, 1]} : vector<9x4x8xbf16> to vector<1x4x8xbf16>
    %18 = vector.shape_cast %17 : vector<1x4x8xbf16> to vector<4x8xbf16>
    %cst_8 = arith.constant dense<0.000000e+00> : vector<256x8xf32>
    %19 = tpu.matmul %16, %18, %cst_8 {dimension_numbers = #tpu.dot_dimension_numbers<[1], [0], [0], [1], [0, 0, 1, 1], [], []>} : vector<256x4xbf16>, vector<4x8xbf16>, vector<256x8xf32> -> vector<256x8xf32>
    %20 = arith.addf %14, %19 : vector<256x8xf32>
    %21 = vector.extract_strided_slice %0 {offsets = [0, 1, 0, 0], sizes = [1, 16, 16, 4], strides = [1, 1, 1, 1]} : vector<1x18x18x4xbf16> to vector<1x16x16x4xbf16>
    %22 = vector.shape_cast %21 : vector<1x16x16x4xbf16> to vector<256x4xbf16>
    %23 = vector.extract_strided_slice %1 {offsets = [3, 0, 0], sizes = [1, 4, 8], strides = [1, 1, 1]} : vector<9x4x8xbf16> to vector<1x4x8xbf16>
    %24 = vector.shape_cast %23 : vector<1x4x8xbf16> to vector<4x8xbf16>
    %cst_9 = arith.constant dense<0.000000e+00> : vector<256x8xf32>
    %25 = tpu.matmul %22, %24, %cst_9 {dimension_numbers = #tpu.dot_dimension_numbers<[1], [0], [0], [1], [0, 0, 1, 1], [], []>} : vector<256x4xbf16>, vector<4x8xbf16>, vector<256x8xf32> -> vector<256x8xf32>
    %26 = arith.addf %20, %25 : vector<256x8xf32>
    %27 = vector.extract_strided_slice %0 {offsets = [0, 1, 1, 0], sizes = [1, 16, 16, 4], strides = [1, 1, 1, 1]} : vector<1x18x18x4xbf16> to vector<1x16x16x4xbf16>
    %28 = vector.shape_cast %27 : vector<1x16x16x4xbf16> to vector<256x4xbf16>
    %29 = vector.extract_strided_slice %1 {offsets = [4, 0, 0], sizes = [1, 4, 8], strides = [1, 1, 1]} : vector<9x4x8xbf16> to vector<1x4x8xbf16>
    %30 = vector.shape_cast %29 : vector<1x4x8xbf16> to vector<4x8xbf16>
    %cst_10 = arith.constant dense<0.000000e+00> : vector<256x8xf32>
    %31 = tpu.matmul %28, %30, %cst_10 {dimension_numbers = #tpu.dot_dimension_numbers<[1], [0], [0], [1], [0, 0, 1, 1], [], []>} : vector<256x4xbf16>, vector<4x8xbf16>, vector<256x8xf32> -> vector<256x8xf32>
    %32 = arith.addf %26, %31 : vector<256x8xf32>
    %33 = vector.extract_strided_slice %0 {offsets = [0, 1, 2, 0], sizes = [1, 16, 16, 4], strides = [1, 1, 1, 1]} : vector<1x18x18x4xbf16> to vector<1x16x16x4xbf16>
    %34 = vector.shape_cast %33 : vector<1x16x16x4xbf16> to vector<256x4xbf16>
    %35 = vector.extract_strided_slice %1 {offsets = [5, 0, 0], sizes = [1, 4, 8], strides = [1, 1, 1]} : vector<9x4x8xbf16> to vector<1x4x8xbf16>
    %36 = vector.shape_cast %35 : vector<1x4x8xbf16> to vector<4x8xbf16>
    %cst_11 = arith.constant dense<0.000000e+00> : vector<256x8xf32>
    %37 = tpu.matmul %34, %36, %cst_11 {dimension_numbers = #tpu.dot_dimension_numbers<[1], [0], [0], [1], [0, 0, 1, 1], [], []>} : vector<256x4xbf16>, vector<4x8xbf16>, vector<256x8xf32> -> vector<256x8xf32>
    %38 = arith.addf %32, %37 : vector<256x8xf32>
    %39 = vector.extract_strided_slice %0 {offsets = [0, 2, 0, 0], sizes = [1, 16, 16, 4], strides = [1, 1, 1, 1]} : vector<1x18x18x4xbf16> to vector<1x16x16x4xbf16>
    %40 = vector.shape_cast %39 : vector<1x16x16x4xbf16> to vector<256x4xbf16>
    %41 = vector.extract_strided_slice %1 {offsets = [6, 0, 0], sizes = [1, 4, 8], strides = [1, 1, 1]} : vector<9x4x8xbf16> to vector<1x4x8xbf16>
    %42 = vector.shape_cast %41 : vector<1x4x8xbf16> to vector<4x8xbf16>
    %cst_12 = arith.constant dense<0.000000e+00> : vector<256x8xf32>
    %43 = tpu.matmul %40, %42, %cst_12 {dimension_numbers = #tpu.dot_dimension_numbers<[1], [0], [0], [1], [0, 0, 1, 1], [], []>} : vector<256x4xbf16>, vector<4x8xbf16>, vector<256x8xf32> -> vector<256x8xf32>
    %44 = arith.addf %38, %43 : vector<256x8xf32>
    %45 = vector.extract_strided_slice %0 {offsets = [0, 2, 1, 0], sizes = [1, 16, 16, 4], strides = [1, 1, 1, 1]} : vector<1x18x18x4xbf16> to vector<1x16x16x4xbf16>
    %46 = vector.shape_cast %45 : vector<1x16x16x4xbf16> to vector<256x4xbf16>
    %47 = vector.extract_strided_slice %1 {offsets = [7, 0, 0], sizes = [1, 4, 8], strides = [1, 1, 1]} : vector<9x4x8xbf16> to vector<1x4x8xbf16>
    %48 = vector.shape_cast %47 : vector<1x4x8xbf16> to vector<4x8xbf16>
    %cst_13 = arith.constant dense<0.000000e+00> : vector<256x8xf32>
    %49 = tpu.matmul %46, %48, %cst_13 {dimension_numbers = #tpu.dot_dimension_numbers<[1], [0], [0], [1], [0, 0, 1, 1], [], []>} : vector<256x4xbf16>, vector<4x8xbf16>, vector<256x8xf32> -> vector<256x8xf32>
    %50 = arith.addf %44, %49 : vector<256x8xf32>
    %51 = vector.extract_strided_slice %0 {offsets = [0, 2, 2, 0], sizes = [1, 16, 16, 4], strides = [1, 1, 1, 1]} : vector<1x18x18x4xbf16> to vector<1x16x16x4xbf16>
    %52 = vector.shape_cast %51 : vector<1x16x16x4xbf16> to vector<256x4xbf16>
    %53 = vector.extract_strided_slice %1 {offsets = [8, 0, 0], sizes = [1, 4, 8], strides = [1, 1, 1]} : vector<9x4x8xbf16> to vector<1x4x8xbf16>
    %54 = vector.shape_cast %53 : vector<1x4x8xbf16> to vector<4x8xbf16>
    %cst_14 = arith.constant dense<0.000000e+00> : vector<256x8xf32>
    %55 = tpu.matmul %52, %54, %cst_14 {dimension_numbers = #tpu.dot_dimension_numbers<[1], [0], [0], [1], [0, 0, 1, 1], [], []>} : vector<256x4xbf16>, vector<4x8xbf16>, vector<256x8xf32> -> vector<256x8xf32>
    %56 = arith.addf %50, %55 : vector<256x8xf32>
    %cst_15 = arith.constant dense<0.000000e+00> : vector<8xf32>
    %57 = vector.multi_reduction <add>, %56, %cst_15 [0] : vector<256x8xf32> to vector<8xf32>
    %58 = vector.shape_cast %57 : vector<8xf32> to vector<1x8xf32>
    %c0_16 = arith.constant 0 : index
    %c0_17 = arith.constant 0 : index
    %c0_18 = arith.constant 0 : index
    %59 = vector.load %arg3[%c0_16, %c0_17, %c0_18] : memref<1x1x8xf32, #tpu.memory_space<vmem>>, vector<1x1x8xf32>
    %60 = vector.shape_cast %59 : vector<1x1x8xf32> to vector<1x8xf32>
    %61 = vector.shape_cast %58 : vector<1x8xf32> to vector<1x1x8xf32>
    tpu.vector_store %arg3[%c0_16, %c0_17, %c0_18], %61 {strides = array<i32>} : memref<1x1x8xf32, #tpu.memory_space<vmem>>, vector<1x1x8xf32>,
    %62 = arith.mulf %56, %56 : vector<256x8xf32>
    %cst_19 = arith.constant dense<0.000000e+00> : vector<8xf32>
    %63 = vector.multi_reduction <add>, %62, %cst_19 [0] : vector<256x8xf32> to vector<8xf32>
    %64 = vector.shape_cast %63 : vector<8xf32> to vector<1x8xf32>
    %c0_20 = arith.constant 0 : index
    %c0_21 = arith.constant 0 : index
    %c0_22 = arith.constant 0 : index
    %65 = vector.load %arg4[%c0_20, %c0_21, %c0_22] : memref<1x1x8xf32, #tpu.memory_space<vmem>>, vector<1x1x8xf32>
    %66 = vector.shape_cast %65 : vector<1x1x8xf32> to vector<1x8xf32>
    %67 = vector.shape_cast %64 : vector<1x8xf32> to vector<1x1x8xf32>
    tpu.vector_store %arg4[%c0_20, %c0_21, %c0_22], %67 {strides = array<i32>} : memref<1x1x8xf32, #tpu.memory_space<vmem>>, vector<1x1x8xf32>,
    return
  }
  func.func @transform_0(%arg0: i32) -> (i32, i32, i32, i32) {
    %c0_i32 = arith.constant 0 : i32
    %c0_i32_0 = arith.constant 0 : i32
    %c0_i32_1 = arith.constant 0 : i32
    %c0_i32_2 = arith.constant 0 : i32
    return %arg0, %c0_i32, %c0_i32_0, %c0_i32_1 : i32, i32, i32, i32
  }
  func.func @transform_1(%arg0: i32) -> (i32, i32, i32) {
    %c0_i32 = arith.constant 0 : i32
    %c0_i32_0 = arith.constant 0 : i32
    %c0_i32_1 = arith.constant 0 : i32
    %c0_i32_2 = arith.constant 0 : i32
    return %c0_i32, %c0_i32_0, %c0_i32_1 : i32, i32, i32
  }
  func.func @transform_2(%arg0: i32) -> (i32, i32, i32) {
    %c0_i32 = arith.constant 0 : i32
    %c0_i32_0 = arith.constant 0 : i32
    %c0_i32_1 = arith.constant 0 : i32
    return %arg0, %c0_i32, %c0_i32_0 : i32, i32, i32
  }
  func.func @transform_3(%arg0: i32) -> (i32, i32, i32) {
    %c0_i32 = arith.constant 0 : i32
    %c0_i32_0 = arith.constant 0 : i32
    %c0_i32_1 = arith.constant 0 : i32
    return %arg0, %c0_i32, %c0_i32_0 : i32, i32, i32
  }
}

</mosaic_0001>

<llo_original>
// kernel: tpu_custom_call.1
$region0: #{tpu_custom_call.1}
  #allocation0 [shape = 'u32[]', space=smem, size = 0x4, offset = 0x4, fixed_abs, tag = 'smem constant byte address 0x4 - core index']
  #allocation1 [shape = 'u32[72,128]{1,0:T(1,128)}', space=vmem, size = 0x9000, scoped, tag = 'internal scratch']
  %s0 = inlined_call_operand.vmem [shape: bf16[2,18,18,4], index: 0, kind: input, shape index: {}]
  %s1 = inlined_call_operand.vmem [shape: bf16[9,4,8], index: 1, kind: input, shape index: {}]
  %s2 = inlined_call_operand.hbm [shape: f32[2,1,8], index: 2, kind: output, shape index: {0}]
  %s3 = inlined_call_operand.hbm [shape: f32[2,1,8], index: 3, kind: output, shape index: {1}]
  %4 = xla_tuple %s2, %s3
  %s5 = sld [smem:[#allocation0]]
  $region49: #{tpu_custom_call.1} parent=0
    _
  %s7 = ssub.s32 1, %s5
  %s8 = scalar_select 0, %s7, %s5
  $region1: #{tpu_custom_call.1} parent=0
    #allocation2 [shape = 'u8[1024]{0}', space=vmem, size = 0x400, scoped, tag = 'output window, operand 0']
    #allocation3 [shape = 's32[2]{0}', space=sflag, size = 0x8, scoped, tag = 'scoped memory for tpu_custom_call.1']
    #allocation4 [shape = 'u8[1024]{0}', space=vmem, size = 0x400, scoped, tag = 'output window, operand 1']
    #allocation5 [shape = 's32[2]{0}', space=sflag, size = 0x8, scoped, tag = 'scoped memory for tpu_custom_call.1']
    %9 = vsyncpa [#allocation3], 0
    %s10 = scalar_lea.sflag [#allocation3], 1
    %11 = vsyncpa %s10, 0
    %12 = vsyncpa [#allocation5], 0
    %s13 = scalar_lea.sflag [#allocation5], 1
    %14 = vsyncpa %s13, 0
    loop: start=0, step=1, limit=4
    $region2: #{tpu_custom_call.1} parent=1 // loop_pre_header
      _
    $region3: #{tpu_custom_call.1} parent=1 // loop_header
      %s16 = sphi 0, %s20
      %p17 = scmp.ge.s32.totalorder %s16, 4
      %s26 = sphi 0, %s28
      %s29 = sphi 0, %s26
      %s30 = sphi 0, %s29
      %s46 = sphi 0, %s30
      %s50 = sphi 0, %s50
      %s52 = sphi 0, %s50
      %s53 = sphi 0, %s52
      %s67 = sphi 0, %s53
      %s73 = sphi 0, %s75
      %s76 = sphi 0, %s73
      %s77 = sphi 0, %s76
      %s93 = sphi 0, %s77
      %s99 = sphi 0, %s101
      %s102 = sphi 0, %s99
      %s103 = sphi 0, %s102
      %s119 = sphi 0, %s103
    $region4: #{tpu_custom_call.1} parent=1 // loop_header_branch
      %19 = sbr.rel (%p17) target = $region8
    $region5: #{tpu_custom_call.1} parent=1 // loop_body
      %s21 = ssub.s32 %s16, 1
      %s22 = ssub.s32 %s16, 2
      %s23 = sadd.s32 %s16, 1
      %s24 = ssub.s32 %s16, %s23
      %p25 = scmp.eq.s32.totalorder %s24, 0
      %s27 = sadd.s32 %s26, 1
      %s28 = scalar_select %p25, %s26, %s27
      %p31 = pneg %p25
      %p32 = scmp.eq.s32.totalorder %s16, 1
      %p33 = por %p31, %p32
      %p34 = scmp.ne.s32.totalorder %s26, %s29
      %p35 = scmp.eq.s32.totalorder %s16, 0
      %p36 = por %p34, %p35
      %p37 = scmp.ne.s32.totalorder %s26, %s29
      %p38 = scmp.eq.s32.totalorder %s21, 1
      %p39 = por %p37, %p38
      %p40 = scmp.ne.s32.totalorder %s29, %s30
      %p41 = scmp.eq.s32.totalorder %s21, 0
      %p42 = por %p40, %p41
      %p43 = scmp.ne.s32.totalorder %s29, %s30
      %p44 = scmp.eq.s32.totalorder %s22, 1
      %p45 = por %p43, %p44
      %p47 = scmp.ne.s32.totalorder %s30, %s46
      %p48 = scmp.eq.s32.totalorder %s22, 0
      %p49 = por %p47, %p48
      %s51 = sadd.s32 %s50, 1
      %p54 = scmp.eq.s32.totalorder %s16, 1
      %p55 = scmp.ne.s32.totalorder %s50, %s52
      %p56 = scmp.eq.s32.totalorder %s16, 0
      %p57 = por %p55, %p56
      %p58 = scmp.ne.s32.totalorder %s50, %s52
      %p59 = scmp.eq.s32.totalorder %s21, 1
      %p60 = por %p58, %p59
      %p61 = scmp.ne.s32.totalorder %s52, %s53
      %p62 = scmp.eq.s32.totalorder %s21, 0
      %p63 = por %p61, %p62
      %p64 = scmp.ne.s32.totalorder %s52, %s53
      %p65 = scmp.eq.s32.totalorder %s22, 1
      %p66 = por %p64, %p65
      %p68 = scmp.ne.s32.totalorder %s53, %s67
      %p69 = scmp.eq.s32.totalorder %s22, 0
      %p70 = por %p68, %p69
      %s71 = ssub.s32 %s16, %s23
      %p72 = scmp.eq.s32.totalorder %s71, 0
      %s74 = sadd.s32 %s73, 1
      %s75 = scalar_select %p72, %s73, %s74
      %p78 = pneg %p72
      %p79 = scmp.eq.s32.totalorder %s16, 1
      %p80 = por %p78, %p79
      %p81 = scmp.ne.s32.totalorder %s73, %s76
      %p82 = scmp.eq.s32.totalorder %s16, 0
      %p83 = por %p81, %p82
      %p84 = scmp.ne.s32.totalorder %s73, %s76
      %p85 = scmp.eq.s32.totalorder %s21, 1
      %p86 = por %p84, %p85
      %p87 = scmp.ne.s32.totalorder %s76, %s77
      %p88 = scmp.eq.s32.totalorder %s21, 0
      %p89 = por %p87, %p88
      %p90 = scmp.ne.s32.totalorder %s76, %s77
      %p91 = scmp.eq.s32.totalorder %s22, 1
      %p92 = por %p90, %p91
      %p94 = scmp.ne.s32.totalorder %s77, %s93
      %p95 = scmp.eq.s32.totalorder %s22, 0
      %p96 = por %p94, %p95
      %s97 = ssub.s32 %s16, %s23
      %p98 = scmp.eq.s32.totalorder %s97, 0
      %s100 = sadd.s32 %s99, 1
      %s101 = scalar_select %p98, %s99, %s100
      %p104 = pneg %p98
      %p105 = scmp.eq.s32.totalorder %s16, 1
      %p106 = por %p104, %p105
      %p107 = scmp.ne.s32.totalorder %s99, %s102
      %p108 = scmp.eq.s32.totalorder %s16, 0
      %p109 = por %p107, %p108
      %p110 = scmp.ne.s32.totalorder %s99, %s102
      %p111 = scmp.eq.s32.totalorder %s21, 1
      %p112 = por %p110, %p111
      %p113 = scmp.ne.s32.totalorder %s102, %s103
      %p114 = scmp.eq.s32.totalorder %s21, 0
      %p115 = por %p113, %p114
      %p116 = scmp.ne.s32.totalorder %s102, %s103
      %p117 = scmp.eq.s32.totalorder %s22, 1
      %p118 = por %p116, %p117
      %p120 = scmp.ne.s32.totalorder %s103, %s119
      %p121 = scmp.eq.s32.totalorder %s22, 0
      %p122 = por %p120, %p121
      %p123 = scmp.le.s32.totalorder 1, %s16
      %p124 = scmp.lt.s32.totalorder %s16, 3
      %p125 = pnand %p123, %p124
      %p126 = pneg %p125
      // Predicated region
      $region9: #{tpu_custom_call.1} parent=5 // pred_check
        _
      $region10: #{tpu_custom_call.1} parent=5 // pred_check_branch
        %128 = sbr.rel (%p125) target = $region12
      $region11: #{tpu_custom_call.1} parent=5 // pred_region
        %s129 = ssub.s32 %s16, 1
        // Predicated region
        $region13: #{tpu_custom_call.1} parent=11 // pred_check
          %p130 = pneg %p63
        $region14: #{tpu_custom_call.1} parent=11 // pred_check_branch
          %132 = sbr.rel (%p130) target = $region16
        $region15: #{tpu_custom_call.1} parent=11 // pred_region
          _
        $region16: #{tpu_custom_call.1} parent=11 // pred_fallthru
          _
      $region12: #{tpu_custom_call.1} parent=5 // pred_fallthru
        _
      %p133 = scmp.lt.s32.totalorder %s16, 2
      // Predicated region
      $region17: #{tpu_custom_call.1} parent=5 // pred_check
        %p134 = pneg %p133
      $region18: #{tpu_custom_call.1} parent=5 // pred_check_branch
        %136 = sbr.rel (%p134) target = $region20
      $region19: #{tpu_custom_call.1} parent=5 // pred_region
        // Predicated region
        $region21: #{tpu_custom_call.1} parent=19 // pred_check
          %p137 = pneg %p36
        $region22: #{tpu_custom_call.1} parent=19 // pred_check_branch
          %139 = sbr.rel (%p137) target = $region24
        $region23: #{tpu_custom_call.1} parent=19 // pred_region
          %p140 = scmp.lt.s32.totalorder %s16, 1
          %s141 = scalar_select %p140, %s16, 1
          %s142 = smul.addr %s141, 54
          %s143 = smul.addr %s142, 4
          %s144 = scalar_lea.vmem %s0, %s143
        $region24: #{tpu_custom_call.1} parent=19 // pred_fallthru
          _
      $region20: #{tpu_custom_call.1} parent=5 // pred_fallthru
        _
      %p145 = scmp.le.s32.totalorder 1, %s16
      %p146 = scmp.lt.s32.totalorder %s16, 3
      %p147 = pnand %p145, %p146
      %p148 = pneg %p147
      // Predicated region
      $region25: #{tpu_custom_call.1} parent=5 // pred_check
        _
      $region26: #{tpu_custom_call.1} parent=5 // pred_check_branch
        %150 = sbr.rel (%p147) target = $region28
      $region27: #{tpu_custom_call.1} parent=5 // pred_region
        %s151 = ssub.s32 %s16, 1
        %p152 = scmp.lt.s32.totalorder %s21, 1
        %s153 = scalar_select %p152, %s21, 1
        %s154 = smul.addr %s153, 54
        %s155 = smul.addr %s154, 4
        %s156 = scalar_lea.vmem %s0, %s155
        %p157 = pneg %p42
        %p158 = pneg %p39
        %p159 = pneg %p63
        %p160 = pneg %p60
        %p161 = pneg %p89
        %p162 = pneg %p86
        %s163 = sand.u32 %s76, 1
        %s164 = scalar_lea.sflag [#allocation3], %s163
        %s165 = sand.u32 %s76, 1
        %s166 = scalar_lea.vmem [#allocation2], %s165
        %p167 = pneg %p115
        %p168 = pneg %p112
        %s169 = sand.u32 %s102, 1
        %s170 = scalar_lea.sflag [#allocation5], %s169
        %s171 = sand.u32 %s102, 1
        %s172 = scalar_lea.vmem [#allocation4], %s171
        %p173 = scmp.lt.s32.totalorder %s21, 1
        %s174 = scalar_select %p173, %s21, 1
        %s175 = smul.addr %s174, 54
        %s176 = smul.addr %s175, 4
        %s177 = scalar_lea.vmem %s0, %s176
        %v179 = vld [vmem:[%s177] sm:$0xf]
        %v180 = vld [vmem:[%s177 + $0x4] sm:$0xf]
        %v181 = vld [vmem:[%s177 + $0x8] sm:$0x1]
        %v182 = vld [vmem:[%s177 + $0xc] sm:$0xf]
        %v183 = vld [vmem:[%s177 + $0x10] sm:$0xf]
        %v184 = vld [vmem:[%s177 + $0x14] sm:$0x1]
        %v185 = vld [vmem:[%s177 + $0x18] sm:$0xf]
        %v186 = vld [vmem:[%s177 + $0x1c] sm:$0xf]
        %v187 = vld [vmem:[%s177 + $0x20] sm:$0x1]
        %v188 = vld [vmem:[%s177 + $0x24] sm:$0xf]
        %v189 = vld [vmem:[%s177 + $0x28] sm:$0xf]
        %v190 = vld [vmem:[%s177 + $0x2c] sm:$0x1]
        %v191 = vld [vmem:[%s177 + $0x30] sm:$0xf]
        %v192 = vld [vmem:[%s177 + $0x34] sm:$0xf]
        %v193 = vld [vmem:[%s177 + $0x38] sm:$0x1]
        %v194 = vld [vmem:[%s177 + $0x3c] sm:$0xf]
        %v195 = vld [vmem:[%s177 + $0x40] sm:$0xf]
        %v196 = vld [vmem:[%s177 + $0x44] sm:$0x1]
        %v197 = vld [vmem:[%s177 + $0x48] sm:$0xf]
        %v198 = vld [vmem:[%s177 + $0x4c] sm:$0xf]
        %v199 = vld [vmem:[%s177 + $0x50] sm:$0x1]
        %v200 = vld [vmem:[%s177 + $0x54] sm:$0xf]
        %v201 = vld [vmem:[%s177 + $0x58] sm:$0xf]
        %v202 = vld [vmem:[%s177 + $0x5c] sm:$0x1]
        %v203 = vld [vmem:[%s177 + $0x60] sm:$0xf]
        %v204 = vld [vmem:[%s177 + $0x64] sm:$0xf]
        %v205 = vld [vmem:[%s177 + $0x68] sm:$0x1]
        %v206 = vld [vmem:[%s177 + $0x6c] sm:$0xf]
        %v207 = vld [vmem:[%s177 + $0x70] sm:$0xf]
        %v208 = vld [vmem:[%s177 + $0x74] sm:$0x1]
        %v209 = vld [vmem:[%s177 + $0x78] sm:$0xf]
        %v210 = vld [vmem:[%s177 + $0x7c] sm:$0xf]
        %v211 = vld [vmem:[%s177 + $0x80] sm:$0x1]
        %v212 = vld [vmem:[%s177 + $0x84] sm:$0xf]
        %v213 = vld [vmem:[%s177 + $0x88] sm:$0xf]
        %v214 = vld [vmem:[%s177 + $0x8c] sm:$0x1]
        %v215 = vld [vmem:[%s177 + $0x90] sm:$0xf]
        %v216 = vld [vmem:[%s177 + $0x94] sm:$0xf]
        %v217 = vld [vmem:[%s177 + $0x98] sm:$0x1]
        %v218 = vld [vmem:[%s177 + $0x9c] sm:$0xf]
        %v219 = vld [vmem:[%s177 + $0xa0] sm:$0xf]
        %v220 = vld [vmem:[%s177 + $0xa4] sm:$0x1]
        %v221 = vld [vmem:[%s177 + $0xa8] sm:$0xf]
        %v222 = vld [vmem:[%s177 + $0xac] sm:$0xf]
        %v223 = vld [vmem:[%s177 + $0xb0] sm:$0x1]
        %v224 = vld [vmem:[%s177 + $0xb4] sm:$0xf]
        %v225 = vld [vmem:[%s177 + $0xb8] sm:$0xf]
        %v226 = vld [vmem:[%s177 + $0xbc] sm:$0x1]
        %v227 = vld [vmem:[%s177 + $0xc0] sm:$0xf]
        %v228 = vld [vmem:[%s177 + $0xc4] sm:$0xf]
        %v229 = vld [vmem:[%s177 + $0xc8] sm:$0x1]
        %v230 = vld [vmem:[%s177 + $0xcc] sm:$0xf]
        %v231 = vld [vmem:[%s177 + $0xd0] sm:$0xf]
        %v232 = vld [vmem:[%s177 + $0xd4] sm:$0x1]
        %v233 = vld [vmem:[%s1] sm:$0x3]
        %v234 = vld [vmem:[%s1 + $0x2] sm:$0x3]
        %v235 = vld [vmem:[%s1 + $0x4] sm:$0x3]
        %v236 = vld [vmem:[%s1 + $0x6] sm:$0x3]
        %v237 = vld [vmem:[%s1 + $0x8] sm:$0x3]
        %v238 = vld [vmem:[%s1 + $0xa] sm:$0x3]
        %v239 = vld [vmem:[%s1 + $0xc] sm:$0x3]
        %v240 = vld [vmem:[%s1 + $0xe] sm:$0x3]
        %v241 = vld [vmem:[%s1 + $0x10] sm:$0x3]
        %vm242 = vsmask.f32 3328
        %vm243 = vsmask.f32 7440
        %vm244 = vmor %vm242, %vm243
        %v246 = vshrl.u32 %v179, 16
        %v248 = vrot.slane %v246, 4
        %v249 = vshll.u32 %v179, 16
        %v251 = vrot.slane %v249, 5
        %v252 = vor.u32 %v248, %v251
        %v253 = vrot.slane %v252, 4
        %v255 = vshll.u32 %v180, 16
        %v257 = vrot.slane %v255, 5
        %v258 = vsel %vm244, %v253, %v257
        %v259 = vshrl.u32 %v180, 16
        %v261 = vrot.slane %v259, 4
        %v262 = vor.u32 %v261, %v257
        %v263 = vrot.slane %v262, 4
        %v265 = vshll.u32 %v181, 16
        %v267 = vrot.slane %v265, 5
        %v268 = vsel %vm244, %v263, %v267
        %v270 = vshrl.u32 %v182, 16
        %v272 = vrot.slane %v270, 4
        %v273 = vshll.u32 %v182, 16
        %v275 = vrot.slane %v273, 5
        %v276 = vor.u32 %v272, %v275
        %v277 = vrot.slane %v276, 4
        %v279 = vshll.u32 %v183, 16
        %v281 = vrot.slane %v279, 5
        %v282 = vsel %vm244, %v277, %v281
        %v283 = vshrl.u32 %v183, 16
        %v285 = vrot.slane %v283, 4
        %v286 = vor.u32 %v285, %v281
        %v287 = vrot.slane %v286, 4
        %v289 = vshll.u32 %v184, 16
        %v291 = vrot.slane %v289, 5
        %v292 = vsel %vm244, %v287, %v291
        %v294 = vshrl.u32 %v185, 16
        %v296 = vrot.slane %v294, 4
        %v297 = vshll.u32 %v185, 16
        %v299 = vrot.slane %v297, 5
        %v300 = vor.u32 %v296, %v299
        %v301 = vrot.slane %v300, 4
        %v303 = vshll.u32 %v186, 16
        %v305 = vrot.slane %v303, 5
        %v306 = vsel %vm244, %v301, %v305
        %v307 = vshrl.u32 %v186, 16
        %v309 = vrot.slane %v307, 4
        %v310 = vor.u32 %v309, %v305
        %v311 = vrot.slane %v310, 4
        %v313 = vshll.u32 %v187, 16
        %v315 = vrot.slane %v313, 5
        %v316 = vsel %vm244, %v311, %v315
        %v318 = vshrl.u32 %v188, 16
        %v320 = vrot.slane %v318, 4
        %v321 = vshll.u32 %v188, 16
        %v323 = vrot.slane %v321, 5
        %v324 = vor.u32 %v320, %v323
        %v325 = vrot.slane %v324, 4
        %v327 = vshll.u32 %v189, 16
        %v329 = vrot.slane %v327, 5
        %v330 = vsel %vm244, %v325, %v329
        %v331 = vshrl.u32 %v189, 16
        %v333 = vrot.slane %v331, 4
        %v334 = vor.u32 %v333, %v329
        %v335 = vrot.slane %v334, 4
        %v337 = vshll.u32 %v190, 16
        %v339 = vrot.slane %v337, 5
        %v340 = vsel %vm244, %v335, %v339
        %v342 = vshrl.u32 %v191, 16
        %v344 = vrot.slane %v342, 4
        %v345 = vshll.u32 %v191, 16
        %v347 = vrot.slane %v345, 5
        %v348 = vor.u32 %v344, %v347
        %v349 = vrot.slane %v348, 4
        %v351 = vshll.u32 %v192, 16
        %v353 = vrot.slane %v351, 5
        %v354 = vsel %vm244, %v349, %v353
        %v355 = vshrl.u32 %v192, 16
        %v357 = vrot.slane %v355, 4
        %v358 = vor.u32 %v357, %v353
        %v359 = vrot.slane %v358, 4
        %v361 = vshll.u32 %v193, 16
        %v363 = vrot.slane %v361, 5
        %v364 = vsel %vm244, %v359, %v363
        %v366 = vshrl.u32 %v194, 16
        %v368 = vrot.slane %v366, 4
        %v369 = vshll.u32 %v194, 16
        %v371 = vrot.slane %v369, 5
        %v372 = vor.u32 %v368, %v371
        %v373 = vrot.slane %v372, 4
        %v375 = vshll.u32 %v195, 16
        %v377 = vrot.slane %v375, 5
        %v378 = vsel %vm244, %v373, %v377
        %v379 = vshrl.u32 %v195, 16
        %v381 = vrot.slane %v379, 4
        %v382 = vor.u32 %v381, %v377
        %v383 = vrot.slane %v382, 4
        %v385 = vshll.u32 %v196, 16
        %v387 = vrot.slane %v385, 5
        %v388 = vsel %vm244, %v383, %v387
        %v390 = vshrl.u32 %v197, 16
        %v392 = vrot.slane %v390, 4
        %v393 = vshll.u32 %v197, 16
        %v395 = vrot.slane %v393, 5
        %v396 = vor.u32 %v392, %v395
        %v397 = vrot.slane %v396, 4
        %v399 = vshll.u32 %v198, 16
        %v401 = vrot.slane %v399, 5
        %v402 = vsel %vm244, %v397, %v401
        %v403 = vshrl.u32 %v198, 16
        %v405 = vrot.slane %v403, 4
        %v406 = vor.u32 %v405, %v401
        %v407 = vrot.slane %v406, 4
        %v409 = vshll.u32 %v199, 16
        %v411 = vrot.slane %v409, 5
        %v412 = vsel %vm244, %v407, %v411
        %v414 = vshrl.u32 %v200, 16
        %v416 = vrot.slane %v414, 4
        %v417 = vshll.u32 %v200, 16
        %v419 = vrot.slane %v417, 5
        %v420 = vor.u32 %v416, %v419
        %v421 = vrot.slane %v420, 4
        %v423 = vshll.u32 %v201, 16
        %v425 = vrot.slane %v423, 5
        %v426 = vsel %vm244, %v421, %v425
        %v427 = vshrl.u32 %v201, 16
        %v429 = vrot.slane %v427, 4
        %v430 = vor.u32 %v429, %v425
        %v431 = vrot.slane %v430, 4
        %v433 = vshll.u32 %v202, 16
        %v435 = vrot.slane %v433, 5
        %v436 = vsel %vm244, %v431, %v435
        %v438 = vshrl.u32 %v203, 16
        %v440 = vrot.slane %v438, 4
        %v441 = vshll.u32 %v203, 16
        %v443 = vrot.slane %v441, 5
        %v444 = vor.u32 %v440, %v443
        %v445 = vrot.slane %v444, 4
        %v447 = vshll.u32 %v204, 16
        %v449 = vrot.slane %v447, 5
        %v450 = vsel %vm244, %v445, %v449
        %v451 = vshrl.u32 %v204, 16
        %v453 = vrot.slane %v451, 4
        %v454 = vor.u32 %v453, %v449
        %v455 = vrot.slane %v454, 4
        %v457 = vshll.u32 %v205, 16
        %v459 = vrot.slane %v457, 5
        %v460 = vsel %vm244, %v455, %v459
        %v462 = vshrl.u32 %v206, 16
        %v464 = vrot.slane %v462, 4
        %v465 = vshll.u32 %v206, 16
        %v467 = vrot.slane %v465, 5
        %v468 = vor.u32 %v464, %v467
        %v469 = vrot.slane %v468, 4
        %v471 = vshll.u32 %v207, 16
        %v473 = vrot.slane %v471, 5
        %v474 = vsel %vm244, %v469, %v473
        %v475 = vshrl.u32 %v207, 16
        %v477 = vrot.slane %v475, 4
        %v478 = vor.u32 %v477, %v473
        %v479 = vrot.slane %v478, 4
        %v481 = vshll.u32 %v208, 16
        %v483 = vrot.slane %v481, 5
        %v484 = vsel %vm244, %v479, %v483
        %v486 = vshrl.u32 %v209, 16
        %v488 = vrot.slane %v486, 4
        %v489 = vshll.u32 %v209, 16
        %v491 = vrot.slane %v489, 5
        %v492 = vor.u32 %v488, %v491
        %v493 = vrot.slane %v492, 4
        %v495 = vshll.u32 %v210, 16
        %v497 = vrot.slane %v495, 5
        %v498 = vsel %vm244, %v493, %v497
        %v499 = vshrl.u32 %v210, 16
        %v501 = vrot.slane %v499, 4
        %v502 = vor.u32 %v501, %v497
        %v503 = vrot.slane %v502, 4
        %v505 = vshll.u32 %v211, 16
        %v507 = vrot.slane %v505, 5
        %v508 = vsel %vm244, %v503, %v507
        %v510 = vshrl.u32 %v212, 16
        %v512 = vrot.slane %v510, 4
        %v513 = vshll.u32 %v212, 16
        %v515 = vrot.slane %v513, 5
        %v516 = vor.u32 %v512, %v515
        %v517 = vrot.slane %v516, 4
        %v519 = vshll.u32 %v213, 16
        %v521 = vrot.slane %v519, 5
        %v522 = vsel %vm244, %v517, %v521
        %v523 = vshrl.u32 %v213, 16
        %v525 = vrot.slane %v523, 4
        %v526 = vor.u32 %v525, %v521
        %v527 = vrot.slane %v526, 4
        %v529 = vshll.u32 %v214, 16
        %v531 = vrot.slane %v529, 5
        %v532 = vsel %vm244, %v527, %v531
        %v534 = vshrl.u32 %v215, 16
        %v536 = vrot.slane %v534, 4
        %v537 = vshll.u32 %v215, 16
        %v539 = vrot.slane %v537, 5
        %v540 = vor.u32 %v536, %v539
        %v541 = vrot.slane %v540, 4
        %v543 = vshll.u32 %v216, 16
        %v545 = vrot.slane %v543, 5
        %v546 = vsel %vm244, %v541, %v545
        %v547 = vshrl.u32 %v216, 16
        %v549 = vrot.slane %v547, 4
        %v550 = vor.u32 %v549, %v545
        %v551 = vrot.slane %v550, 4
        %v553 = vshll.u32 %v217, 16
        %v555 = vrot.slane %v553, 5
        %v556 = vsel %vm244, %v551, %v555
        %v558 = vshrl.u32 %v218, 16
        %v560 = vrot.slane %v558, 4
        %v561 = vshll.u32 %v218, 16
        %v563 = vrot.slane %v561, 5
        %v564 = vor.u32 %v560, %v563
        %v565 = vrot.slane %v564, 4
        %v567 = vshll.u32 %v219, 16
        %v569 = vrot.slane %v567, 5
        %v570 = vsel %vm244, %v565, %v569
        %v571 = vshrl.u32 %v219, 16
        %v573 = vrot.slane %v571, 4
        %v574 = vor.u32 %v573, %v569
        %v575 = vrot.slane %v574, 4
        %v577 = vshll.u32 %v220, 16
        %v579 = vrot.slane %v577, 5
        %v580 = vsel %vm244, %v575, %v579
        %v582 = vshrl.u32 %v221, 16
        %v584 = vrot.slane %v582, 4
        %v585 = vshll.u32 %v221, 16
        %v587 = vrot.slane %v585, 5
        %v588 = vor.u32 %v584, %v587
        %v589 = vrot.slane %v588, 4
        %v591 = vshll.u32 %v222, 16
        %v593 = vrot.slane %v591, 5
        %v594 = vsel %vm244, %v589, %v593
        %v595 = vshrl.u32 %v222, 16
        %v597 = vrot.slane %v595, 4
        %v598 = vor.u32 %v597, %v593
        %v599 = vrot.slane %v598, 4
        %v601 = vshll.u32 %v223, 16
        %v603 = vrot.slane %v601, 5
        %v604 = vsel %vm244, %v599, %v603
        %v606 = vshrl.u32 %v224, 16
        %v608 = vrot.slane %v606, 4
        %v609 = vshll.u32 %v224, 16
        %v611 = vrot.slane %v609, 5
        %v612 = vor.u32 %v608, %v611
        %v613 = vrot.slane %v612, 4
        %v615 = vshll.u32 %v225, 16
        %v617 = vrot.slane %v615, 5
        %v618 = vsel %vm244, %v613, %v617
        %v619 = vshrl.u32 %v225, 16
        %v621 = vrot.slane %v619, 4
        %v622 = vor.u32 %v621, %v617
        %v623 = vrot.slane %v622, 4
        %v625 = vshll.u32 %v226, 16
        %v627 = vrot.slane %v625, 5
        %v628 = vsel %vm244, %v623, %v627
        %v629 = vunpack.c.l.b16 %v258
        %v630 = vunpack.c.l.b16 %v268
        %v631 = vunpack.c.l.b16 %v282
        %v632 = vunpack.c.l.b16 %v292
        %v633 = vunpack.c.l.b16 %v306
        %v634 = vunpack.c.l.b16 %v316
        %v635 = vunpack.c.l.b16 %v330
        %v636 = vunpack.c.l.b16 %v340
        %v637 = vunpack.c.l.b16 %v354
        %v638 = vunpack.c.l.b16 %v364
        %v639 = vunpack.c.l.b16 %v378
        %v640 = vunpack.c.l.b16 %v388
        %v641 = vunpack.c.l.b16 %v402
        %v642 = vunpack.c.l.b16 %v412
        %v643 = vunpack.c.l.b16 %v426
        %v644 = vunpack.c.l.b16 %v436
        %v645 = vunpack.c.l.b16 %v450
        %v646 = vunpack.c.l.b16 %v460
        %v647 = vunpack.c.l.b16 %v474
        %v648 = vunpack.c.l.b16 %v484
        %v649 = vunpack.c.l.b16 %v498
        %v650 = vunpack.c.l.b16 %v508
        %v651 = vunpack.c.l.b16 %v522
        %v652 = vunpack.c.l.b16 %v532
        %v653 = vunpack.c.l.b16 %v546
        %v654 = vunpack.c.l.b16 %v556
        %v655 = vunpack.c.l.b16 %v570
        %v656 = vunpack.c.l.b16 %v580
        %v657 = vunpack.c.l.b16 %v594
        %v658 = vunpack.c.l.b16 %v604
        %v659 = vunpack.c.l.b16 %v618
        %v660 = vunpack.c.l.b16 %v628
        %v661 = vpack.c.b16 %v630, %v629
        %v662 = vpack.c.b16 %v632, %v631
        %v663 = vpack.c.b16 %v634, %v633
        %v664 = vpack.c.b16 %v636, %v635
        %v665 = vpack.c.b16 %v638, %v637
        %v666 = vpack.c.b16 %v640, %v639
        %v667 = vpack.c.b16 %v642, %v641
        %v668 = vpack.c.b16 %v644, %v643
        %v669 = vpack.c.b16 %v646, %v645
        %v670 = vpack.c.b16 %v648, %v647
        %v671 = vpack.c.b16 %v650, %v649
        %v672 = vpack.c.b16 %v652, %v651
        %v673 = vpack.c.b16 %v654, %v653
        %v674 = vpack.c.b16 %v656, %v655
        %v675 = vpack.c.b16 %v658, %v657
        %v676 = vpack.c.b16 %v660, %v659
        %vm677 = vcmask 31744
        %v679 = vsel %vm677, %v661, 0
        %v682 = vsel %vm677, %v662, 0
        %v685 = vsel %vm677, %v663, 0
        %v688 = vsel %vm677, %v664, 0
        %v691 = vsel %vm677, %v665, 0
        %v694 = vsel %vm677, %v666, 0
        %v697 = vsel %vm677, %v667, 0
        %v700 = vsel %vm677, %v668, 0
        %v703 = vsel %vm677, %v669, 0
        %v706 = vsel %vm677, %v670, 0
        %v709 = vsel %vm677, %v671, 0
        %v712 = vsel %vm677, %v672, 0
        %v715 = vsel %vm677, %v673, 0
        %v718 = vsel %vm677, %v674, 0
        %v721 = vsel %vm677, %v675, 0
        %v724 = vsel %vm677, %v676, 0
        %vm726 = vcmask 1041408
        %v728 = vsel %vm726, %v234, 0
        %730 = vmatpush.bf16.msra.mxu0 0
        %731 = vmatpush.bf16.msra.mxu0 0
        %732 = vmatpush.bf16.msra.mxu0 0
        %733 = vmatpush.bf16.msra.mxu0 0
        %734 = vmatpush.bf16.msra.mxu0 0
        %735 = vmatpush.bf16.msra.mxu0 0
        %736 = vmatpush.bf16.msra.mxu0 0
        %737 = vmatpush.bf16.msra.mxu0 %v728
        %738 = vmatmul.bf16.gmra.mxu0 %v679
        %v739 = vpop.f32.mrf.mxu0
        %v740 = vadd.f32 0.0, %v739
        %v741 = vpop.f32.mrf.mxu0
        %v742 = vadd.f32 0.0, %v741
        %743 = vmatmul.bf16.gmra.mxu0 %v682
        %v744 = vpop.f32.mrf.mxu0
        %v745 = vadd.f32 0.0, %v744
        %v746 = vpop.f32.mrf.mxu0
        %v747 = vadd.f32 0.0, %v746
        %748 = vmatmul.bf16.gmra.mxu0 %v685
        %v749 = vpop.f32.mrf.mxu0
        %v750 = vadd.f32 0.0, %v749
        %v751 = vpop.f32.mrf.mxu0
        %v752 = vadd.f32 0.0, %v751
        %753 = vmatmul.bf16.gmra.mxu0 %v688
        %v754 = vpop.f32.mrf.mxu0
        %v755 = vadd.f32 0.0, %v754
        %v756 = vpop.f32.mrf.mxu0
        %v757 = vadd.f32 0.0, %v756
        %758 = vmatmul.bf16.gmra.mxu0 %v691
        %v759 = vpop.f32.mrf.mxu0
        %v760 = vadd.f32 0.0, %v759
        %v761 = vpop.f32.mrf.mxu0
        %v762 = vadd.f32 0.0, %v761
        %763 = vmatmul.bf16.gmra.mxu0 %v694
        %v764 = vpop.f32.mrf.mxu0
        %v765 = vadd.f32 0.0, %v764
        %v766 = vpop.f32.mrf.mxu0
        %v767 = vadd.f32 0.0, %v766
        %768 = vmatmul.bf16.gmra.mxu0 %v697
        %v769 = vpop.f32.mrf.mxu0
        %v770 = vadd.f32 0.0, %v769
        %v771 = vpop.f32.mrf.mxu0
        %v772 = vadd.f32 0.0, %v771
        %773 = vmatmul.bf16.gmra.mxu0 %v700
        %v774 = vpop.f32.mrf.mxu0
        %v775 = vadd.f32 0.0, %v774
        %v776 = vpop.f32.mrf.mxu0
        %v777 = vadd.f32 0.0, %v776
        %778 = vmatmul.bf16.gmra.mxu0 %v703
        %v779 = vpop.f32.mrf.mxu0
        %v780 = vadd.f32 0.0, %v779
        %v781 = vpop.f32.mrf.mxu0
        %v782 = vadd.f32 0.0, %v781
        %783 = vmatmul.bf16.gmra.mxu0 %v706
        %v784 = vpop.f32.mrf.mxu0
        %v785 = vadd.f32 0.0, %v784
        %v786 = vpop.f32.mrf.mxu0
        %v787 = vadd.f32 0.0, %v786
        %788 = vmatmul.bf16.gmra.mxu0 %v709
        %v789 = vpop.f32.mrf.mxu0
        %v790 = vadd.f32 0.0, %v789
        %v791 = vpop.f32.mrf.mxu0
        %v792 = vadd.f32 0.0, %v791
        %793 = vmatmul.bf16.gmra.mxu0 %v712
        %v794 = vpop.f32.mrf.mxu0
        %v795 = vadd.f32 0.0, %v794
        %v796 = vpop.f32.mrf.mxu0
        %v797 = vadd.f32 0.0, %v796
        %798 = vmatmul.bf16.gmra.mxu0 %v715
        %v799 = vpop.f32.mrf.mxu0
        %v800 = vadd.f32 0.0, %v799
        %v801 = vpop.f32.mrf.mxu0
        %v802 = vadd.f32 0.0, %v801
        %803 = vmatmul.bf16.gmra.mxu0 %v718
        %v804 = vpop.f32.mrf.mxu0
        %v805 = vadd.f32 0.0, %v804
        %v806 = vpop.f32.mrf.mxu0
        %v807 = vadd.f32 0.0, %v806
        %808 = vmatmul.bf16.gmra.mxu0 %v721
        %v809 = vpop.f32.mrf.mxu0
        %v810 = vadd.f32 0.0, %v809
        %v811 = vpop.f32.mrf.mxu0
        %v812 = vadd.f32 0.0, %v811
        %813 = vmatmul.bf16.gmra.mxu0 %v724
        %v814 = vpop.f32.mrf.mxu0
        %v815 = vadd.f32 0.0, %v814
        %v816 = vpop.f32.mrf.mxu0
        %v817 = vadd.f32 0.0, %v816
        %818 = vdwg.mxu0
        %v851 = vunpack.c.l.b16 %v179
        %v852 = vunpack.c.l.b16 %v180
        %v853 = vunpack.c.l.b16 %v182
        %v854 = vunpack.c.l.b16 %v183
        %v855 = vunpack.c.l.b16 %v185
        %v856 = vunpack.c.l.b16 %v186
        %v857 = vunpack.c.l.b16 %v188
        %v858 = vunpack.c.l.b16 %v189
        %v859 = vunpack.c.l.b16 %v191
        %v860 = vunpack.c.l.b16 %v192
        %v861 = vunpack.c.l.b16 %v194
        %v862 = vunpack.c.l.b16 %v195
        %v863 = vunpack.c.l.b16 %v197
        %v864 = vunpack.c.l.b16 %v198
        %v865 = vunpack.c.l.b16 %v200
        %v866 = vunpack.c.l.b16 %v201
        %v867 = vunpack.c.l.b16 %v203
        %v868 = vunpack.c.l.b16 %v204
        %v869 = vunpack.c.l.b16 %v206
        %v870 = vunpack.c.l.b16 %v207
        %v871 = vunpack.c.l.b16 %v209
        %v872 = vunpack.c.l.b16 %v210
        %v873 = vunpack.c.l.b16 %v212
        %v874 = vunpack.c.l.b16 %v213
        %v875 = vunpack.c.l.b16 %v215
        %v876 = vunpack.c.l.b16 %v216
        %v877 = vunpack.c.l.b16 %v218
        %v878 = vunpack.c.l.b16 %v219
        %v879 = vunpack.c.l.b16 %v221
        %v880 = vunpack.c.l.b16 %v222
        %v881 = vunpack.c.l.b16 %v224
        %v882 = vunpack.c.l.b16 %v225
        %v883 = vpack.c.b16 %v852, %v851
        %v884 = vpack.c.b16 %v854, %v853
        %v885 = vpack.c.b16 %v856, %v855
        %v886 = vpack.c.b16 %v858, %v857
        %v887 = vpack.c.b16 %v860, %v859
        %v888 = vpack.c.b16 %v862, %v861
        %v889 = vpack.c.b16 %v864, %v863
        %v890 = vpack.c.b16 %v866, %v865
        %v891 = vpack.c.b16 %v868, %v867
        %v892 = vpack.c.b16 %v870, %v869
        %v893 = vpack.c.b16 %v872, %v871
        %v894 = vpack.c.b16 %v874, %v873
        %v895 = vpack.c.b16 %v876, %v875
        %v896 = vpack.c.b16 %v878, %v877
        %v897 = vpack.c.b16 %v880, %v879
        %v898 = vpack.c.b16 %v882, %v881
        %v900 = vsel %vm677, %v883, 0
        %v903 = vsel %vm677, %v884, 0
        %v906 = vsel %vm677, %v885, 0
        %v909 = vsel %vm677, %v886, 0
        %v912 = vsel %vm677, %v887, 0
        %v915 = vsel %vm677, %v888, 0
        %v918 = vsel %vm677, %v889, 0
        %v921 = vsel %vm677, %v890, 0
        %v924 = vsel %vm677, %v891, 0
        %v927 = vsel %vm677, %v892, 0
        %v930 = vsel %vm677, %v893, 0
        %v933 = vsel %vm677, %v894, 0
        %v936 = vsel %vm677, %v895, 0
        %v939 = vsel %vm677, %v896, 0
        %v942 = vsel %vm677, %v897, 0
        %v945 = vsel %vm677, %v898, 0
        %v948 = vsel %vm726, %v233, 0
        %950 = vmatpush.bf16.msra.mxu0 0
        %951 = vmatpush.bf16.msra.mxu0 0
        %952 = vmatpush.bf16.msra.mxu0 0
        %953 = vmatpush.bf16.msra.mxu0 0
        %954 = vmatpush.bf16.msra.mxu0 0
        %955 = vmatpush.bf16.msra.mxu0 0
        %956 = vmatpush.bf16.msra.mxu0 0
        %957 = vmatpush.bf16.msra.mxu0 %v948
        %958 = vmatmul.bf16.gmra.mxu0 %v900
        %v959 = vpop.f32.mrf.mxu0
        %v960 = vadd.f32 %v740, %v959
        %v961 = vpop.f32.mrf.mxu0
        %v962 = vadd.f32 %v742, %v961
        %963 = vmatmul.bf16.gmra.mxu0 %v903
        %v964 = vpop.f32.mrf.mxu0
        %v965 = vadd.f32 %v745, %v964
        %v966 = vpop.f32.mrf.mxu0
        %v967 = vadd.f32 %v747, %v966
        %968 = vmatmul.bf16.gmra.mxu0 %v906
        %v969 = vpop.f32.mrf.mxu0
        %v970 = vadd.f32 %v750, %v969
        %v971 = vpop.f32.mrf.mxu0
        %v972 = vadd.f32 %v752, %v971
        %973 = vmatmul.bf16.gmra.mxu0 %v909
        %v974 = vpop.f32.mrf.mxu0
        %v975 = vadd.f32 %v755, %v974
        %v976 = vpop.f32.mrf.mxu0
        %v977 = vadd.f32 %v757, %v976
        %978 = vmatmul.bf16.gmra.mxu0 %v912
        %v979 = vpop.f32.mrf.mxu0
        %v980 = vadd.f32 %v760, %v979
        %v981 = vpop.f32.mrf.mxu0
        %v982 = vadd.f32 %v762, %v981
        %983 = vmatmul.bf16.gmra.mxu0 %v915
        %v984 = vpop.f32.mrf.mxu0
        %v985 = vadd.f32 %v765, %v984
        %v986 = vpop.f32.mrf.mxu0
        %v987 = vadd.f32 %v767, %v986
        %988 = vmatmul.bf16.gmra.mxu0 %v918
        %v989 = vpop.f32.mrf.mxu0
        %v990 = vadd.f32 %v770, %v989
        %v991 = vpop.f32.mrf.mxu0
        %v992 = vadd.f32 %v772, %v991
        %993 = vmatmul.bf16.gmra.mxu0 %v921
        %v994 = vpop.f32.mrf.mxu0
        %v995 = vadd.f32 %v775, %v994
        %v996 = vpop.f32.mrf.mxu0
        %v997 = vadd.f32 %v777, %v996
        %998 = vmatmul.bf16.gmra.mxu0 %v924
        %v999 = vpop.f32.mrf.mxu0
        %v1000 = vadd.f32 %v780, %v999
        %v1001 = vpop.f32.mrf.mxu0
        %v1002 = vadd.f32 %v782, %v1001
        %1003 = vmatmul.bf16.gmra.mxu0 %v927
        %v1004 = vpop.f32.mrf.mxu0
        %v1005 = vadd.f32 %v785, %v1004
        %v1006 = vpop.f32.mrf.mxu0
        %v1007 = vadd.f32 %v787, %v1006
        %1008 = vmatmul.bf16.gmra.mxu0 %v930
        %v1009 = vpop.f32.mrf.mxu0
        %v1010 = vadd.f32 %v790, %v1009
        %v1011 = vpop.f32.mrf.mxu0
        %v1012 = vadd.f32 %v792, %v1011
        %1013 = vmatmul.bf16.gmra.mxu0 %v933
        %v1014 = vpop.f32.mrf.mxu0
        %v1015 = vadd.f32 %v795, %v1014
        %v1016 = vpop.f32.mrf.mxu0
        %v1017 = vadd.f32 %v797, %v1016
        %1018 = vmatmul.bf16.gmra.mxu0 %v936
        %v1019 = vpop.f32.mrf.mxu0
        %v1020 = vadd.f32 %v800, %v1019
        %v1021 = vpop.f32.mrf.mxu0
        %v1022 = vadd.f32 %v802, %v1021
        %1023 = vmatmul.bf16.gmra.mxu0 %v939
        %v1024 = vpop.f32.mrf.mxu0
        %v1025 = vadd.f32 %v805, %v1024
        %v1026 = vpop.f32.mrf.mxu0
        %v1027 = vadd.f32 %v807, %v1026
        %1028 = vmatmul.bf16.gmra.mxu0 %v942
        %v1029 = vpop.f32.mrf.mxu0
        %v1030 = vadd.f32 %v810, %v1029
        %v1031 = vpop.f32.mrf.mxu0
        %v1032 = vadd.f32 %v812, %v1031
        %1033 = vmatmul.bf16.gmra.mxu0 %v945
        %v1034 = vpop.f32.mrf.mxu0
        %v1035 = vadd.f32 %v815, %v1034
        %v1036 = vpop.f32.mrf.mxu0
        %v1037 = vadd.f32 %v817, %v1036
        %1038 = vdwg.mxu0
        %vm1055 = vcmask 1042432
        %vm1056 = vcmask 1046532
        %vm1057 = vmor %vm1055, %vm1056
        %v1058 = vrot.slane %v179, 5
        %v1059 = vrot.slane %v1058, 4
        %v1060 = vrot.slane %v180, 5
        %v1061 = vsel %vm1057, %v1059, %v1060
        %v1062 = vrot.slane %v1060, 4
        %v1063 = vrot.slane %v181, 5
        %v1064 = vsel %vm1057, %v1062, %v1063
        %v1065 = vrot.slane %v182, 5
        %v1066 = vrot.slane %v1065, 4
        %v1067 = vrot.slane %v183, 5
        %v1068 = vsel %vm1057, %v1066, %v1067
        %v1069 = vrot.slane %v1067, 4
        %v1070 = vrot.slane %v184, 5
        %v1071 = vsel %vm1057, %v1069, %v1070
        %v1072 = vrot.slane %v185, 5
        %v1073 = vrot.slane %v1072, 4
        %v1074 = vrot.slane %v186, 5
        %v1075 = vsel %vm1057, %v1073, %v1074
        %v1076 = vrot.slane %v1074, 4
        %v1077 = vrot.slane %v187, 5
        %v1078 = vsel %vm1057, %v1076, %v1077
        %v1079 = vrot.slane %v188, 5
        %v1080 = vrot.slane %v1079, 4
        %v1081 = vrot.slane %v189, 5
        %v1082 = vsel %vm1057, %v1080, %v1081
        %v1083 = vrot.slane %v1081, 4
        %v1084 = vrot.slane %v190, 5
        %v1085 = vsel %vm1057, %v1083, %v1084
        %v1086 = vrot.slane %v191, 5
        %v1087 = vrot.slane %v1086, 4
        %v1088 = vrot.slane %v192, 5
        %v1089 = vsel %vm1057, %v1087, %v1088
        %v1090 = vrot.slane %v1088, 4
        %v1091 = vrot.slane %v193, 5
        %v1092 = vsel %vm1057, %v1090, %v1091
        %v1093 = vrot.slane %v194, 5
        %v1094 = vrot.slane %v1093, 4
        %v1095 = vrot.slane %v195, 5
        %v1096 = vsel %vm1057, %v1094, %v1095
        %v1097 = vrot.slane %v1095, 4
        %v1098 = vrot.slane %v196, 5
        %v1099 = vsel %vm1057, %v1097, %v1098
        %v1100 = vrot.slane %v197, 5
        %v1101 = vrot.slane %v1100, 4
        %v1102 = vrot.slane %v198, 5
        %v1103 = vsel %vm1057, %v1101, %v1102
        %v1104 = vrot.slane %v1102, 4
        %v1105 = vrot.slane %v199, 5
        %v1106 = vsel %vm1057, %v1104, %v1105
        %v1107 = vrot.slane %v200, 5
        %v1108 = vrot.slane %v1107, 4
        %v1109 = vrot.slane %v201, 5
        %v1110 = vsel %vm1057, %v1108, %v1109
        %v1111 = vrot.slane %v1109, 4
        %v1112 = vrot.slane %v202, 5
        %v1113 = vsel %vm1057, %v1111, %v1112
        %v1114 = vrot.slane %v203, 5
        %v1115 = vrot.slane %v1114, 4
        %v1116 = vrot.slane %v204, 5
        %v1117 = vsel %vm1057, %v1115, %v1116
        %v1118 = vrot.slane %v1116, 4
        %v1119 = vrot.slane %v205, 5
        %v1120 = vsel %vm1057, %v1118, %v1119
        %v1121 = vrot.slane %v206, 5
        %v1122 = vrot.slane %v1121, 4
        %v1123 = vrot.slane %v207, 5
        %v1124 = vsel %vm1057, %v1122, %v1123
        %v1125 = vrot.slane %v1123, 4
        %v1126 = vrot.slane %v208, 5
        %v1127 = vsel %vm1057, %v1125, %v1126
        %v1128 = vrot.slane %v209, 5
        %v1129 = vrot.slane %v1128, 4
        %v1130 = vrot.slane %v210, 5
        %v1131 = vsel %vm1057, %v1129, %v1130
        %v1132 = vrot.slane %v1130, 4
        %v1133 = vrot.slane %v211, 5
        %v1134 = vsel %vm1057, %v1132, %v1133
        %v1135 = vrot.slane %v212, 5
        %v1136 = vrot.slane %v1135, 4
        %v1137 = vrot.slane %v213, 5
        %v1138 = vsel %vm1057, %v1136, %v1137
        %v1139 = vrot.slane %v1137, 4
        %v1140 = vrot.slane %v214, 5
        %v1141 = vsel %vm1057, %v1139, %v1140
        %v1142 = vrot.slane %v215, 5
        %v1143 = vrot.slane %v1142, 4
        %v1144 = vrot.slane %v216, 5
        %v1145 = vsel %vm1057, %v1143, %v1144
        %v1146 = vrot.slane %v1144, 4
        %v1147 = vrot.slane %v217, 5
        %v1148 = vsel %vm1057, %v1146, %v1147
        %v1149 = vrot.slane %v218, 5
        %v1150 = vrot.slane %v1149, 4
        %v1151 = vrot.slane %v219, 5
        %v1152 = vsel %vm1057, %v1150, %v1151
        %v1153 = vrot.slane %v1151, 4
        %v1154 = vrot.slane %v220, 5
        %v1155 = vsel %vm1057, %v1153, %v1154
        %v1156 = vrot.slane %v221, 5
        %v1157 = vrot.slane %v1156, 4
        %v1158 = vrot.slane %v222, 5
        %v1159 = vsel %vm1057, %v1157, %v1158
        %v1160 = vrot.slane %v1158, 4
        %v1161 = vrot.slane %v223, 5
        %v1162 = vsel %vm1057, %v1160, %v1161
        %v1163 = vrot.slane %v224, 5
        %v1164 = vrot.slane %v1163, 4
        %v1165 = vrot.slane %v225, 5
        %v1166 = vsel %vm1057, %v1164, %v1165
        %v1167 = vrot.slane %v1165, 4
        %v1168 = vrot.slane %v226, 5
        %v1169 = vsel %vm1057, %v1167, %v1168
        %v1170 = vunpack.c.l.b16 %v1061
        %v1171 = vunpack.c.l.b16 %v1064
        %v1172 = vunpack.c.l.b16 %v1068
        %v1173 = vunpack.c.l.b16 %v1071
        %v1174 = vunpack.c.l.b16 %v1075
        %v1175 = vunpack.c.l.b16 %v1078
        %v1176 = vunpack.c.l.b16 %v1082
        %v1177 = vunpack.c.l.b16 %v1085
        %v1178 = vunpack.c.l.b16 %v1089
        %v1179 = vunpack.c.l.b16 %v1092
        %v1180 = vunpack.c.l.b16 %v1096
        %v1181 = vunpack.c.l.b16 %v1099
        %v1182 = vunpack.c.l.b16 %v1103
        %v1183 = vunpack.c.l.b16 %v1106
        %v1184 = vunpack.c.l.b16 %v1110
        %v1185 = vunpack.c.l.b16 %v1113
        %v1186 = vunpack.c.l.b16 %v1117
        %v1187 = vunpack.c.l.b16 %v1120
        %v1188 = vunpack.c.l.b16 %v1124
        %v1189 = vunpack.c.l.b16 %v1127
        %v1190 = vunpack.c.l.b16 %v1131
        %v1191 = vunpack.c.l.b16 %v1134
        %v1192 = vunpack.c.l.b16 %v1138
        %v1193 = vunpack.c.l.b16 %v1141
        %v1194 = vunpack.c.l.b16 %v1145
        %v1195 = vunpack.c.l.b16 %v1148
        %v1196 = vunpack.c.l.b16 %v1152
        %v1197 = vunpack.c.l.b16 %v1155
        %v1198 = vunpack.c.l.b16 %v1159
        %v1199 = vunpack.c.l.b16 %v1162
        %v1200 = vunpack.c.l.b16 %v1166
        %v1201 = vunpack.c.l.b16 %v1169
        %v1202 = vpack.c.b16 %v1171, %v1170
        %v1203 = vpack.c.b16 %v1173, %v1172
        %v1204 = vpack.c.b16 %v1175, %v1174
        %v1205 = vpack.c.b16 %v1177, %v1176
        %v1206 = vpack.c.b16 %v1179, %v1178
        %v1207 = vpack.c.b16 %v1181, %v1180
        %v1208 = vpack.c.b16 %v1183, %v1182
        %v1209 = vpack.c.b16 %v1185, %v1184
        %v1210 = vpack.c.b16 %v1187, %v1186
        %v1211 = vpack.c.b16 %v1189, %v1188
        %v1212 = vpack.c.b16 %v1191, %v1190
        %v1213 = vpack.c.b16 %v1193, %v1192
        %v1214 = vpack.c.b16 %v1195, %v1194
        %v1215 = vpack.c.b16 %v1197, %v1196
        %v1216 = vpack.c.b16 %v1199, %v1198
        %v1217 = vpack.c.b16 %v1201, %v1200
        %v1219 = vsel %vm677, %v1202, 0
        %v1222 = vsel %vm677, %v1203, 0
        %v1225 = vsel %vm677, %v1204, 0
        %v1228 = vsel %vm677, %v1205, 0
        %v1231 = vsel %vm677, %v1206, 0
        %v1234 = vsel %vm677, %v1207, 0
        %v1237 = vsel %vm677, %v1208, 0
        %v1240 = vsel %vm677, %v1209, 0
        %v1243 = vsel %vm677, %v1210, 0
        %v1246 = vsel %vm677, %v1211, 0
        %v1249 = vsel %vm677, %v1212, 0
        %v1252 = vsel %vm677, %v1213, 0
        %v1255 = vsel %vm677, %v1214, 0
        %v1258 = vsel %vm677, %v1215, 0
        %v1261 = vsel %vm677, %v1216, 0
        %v1264 = vsel %vm677, %v1217, 0
        %v1267 = vsel %vm726, %v235, 0
        %1269 = vmatpush.bf16.msra.mxu0 0
        %1270 = vmatpush.bf16.msra.mxu0 0
        %1271 = vmatpush.bf16.msra.mxu0 0
        %1272 = vmatpush.bf16.msra.mxu0 0
        %1273 = vmatpush.bf16.msra.mxu0 0
        %1274 = vmatpush.bf16.msra.mxu0 0
        %1275 = vmatpush.bf16.msra.mxu0 0
        %1276 = vmatpush.bf16.msra.mxu0 %v1267
        %1277 = vmatmul.bf16.gmra.mxu0 %v1219
        %v1278 = vpop.f32.mrf.mxu0
        %v1279 = vadd.f32 0.0, %v1278
        %v1280 = vpop.f32.mrf.mxu0
        %v1281 = vadd.f32 0.0, %v1280
        %1282 = vmatmul.bf16.gmra.mxu0 %v1222
        %v1283 = vpop.f32.mrf.mxu0
        %v1284 = vadd.f32 0.0, %v1283
        %v1285 = vpop.f32.mrf.mxu0
        %v1286 = vadd.f32 0.0, %v1285
        %1287 = vmatmul.bf16.gmra.mxu0 %v1225
        %v1288 = vpop.f32.mrf.mxu0
        %v1289 = vadd.f32 0.0, %v1288
        %v1290 = vpop.f32.mrf.mxu0
        %v1291 = vadd.f32 0.0, %v1290
        %1292 = vmatmul.bf16.gmra.mxu0 %v1228
        %v1293 = vpop.f32.mrf.mxu0
        %v1294 = vadd.f32 0.0, %v1293
        %v1295 = vpop.f32.mrf.mxu0
        %v1296 = vadd.f32 0.0, %v1295
        %1297 = vmatmul.bf16.gmra.mxu0 %v1231
        %v1298 = vpop.f32.mrf.mxu0
        %v1299 = vadd.f32 0.0, %v1298
        %v1300 = vpop.f32.mrf.mxu0
        %v1301 = vadd.f32 0.0, %v1300
        %1302 = vmatmul.bf16.gmra.mxu0 %v1234
        %v1303 = vpop.f32.mrf.mxu0
        %v1304 = vadd.f32 0.0, %v1303
        %v1305 = vpop.f32.mrf.mxu0
        %v1306 = vadd.f32 0.0, %v1305
        %1307 = vmatmul.bf16.gmra.mxu0 %v1237
        %v1308 = vpop.f32.mrf.mxu0
        %v1309 = vadd.f32 0.0, %v1308
        %v1310 = vpop.f32.mrf.mxu0
        %v1311 = vadd.f32 0.0, %v1310
        %1312 = vmatmul.bf16.gmra.mxu0 %v1240
        %v1313 = vpop.f32.mrf.mxu0
        %v1314 = vadd.f32 0.0, %v1313
        %v1315 = vpop.f32.mrf.mxu0
        %v1316 = vadd.f32 0.0, %v1315
        %1317 = vmatmul.bf16.gmra.mxu0 %v1243
        %v1318 = vpop.f32.mrf.mxu0
        %v1319 = vadd.f32 0.0, %v1318
        %v1320 = vpop.f32.mrf.mxu0
        %v1321 = vadd.f32 0.0, %v1320
        %1322 = vmatmul.bf16.gmra.mxu0 %v1246
        %v1323 = vpop.f32.mrf.mxu0
        %v1324 = vadd.f32 0.0, %v1323
        %v1325 = vpop.f32.mrf.mxu0
        %v1326 = vadd.f32 0.0, %v1325
        %1327 = vmatmul.bf16.gmra.mxu0 %v1249
        %v1328 = vpop.f32.mrf.mxu0
        %v1329 = vadd.f32 0.0, %v1328
        %v1330 = vpop.f32.mrf.mxu0
        %v1331 = vadd.f32 0.0, %v1330
        %1332 = vmatmul.bf16.gmra.mxu0 %v1252
        %v1333 = vpop.f32.mrf.mxu0
        %v1334 = vadd.f32 0.0, %v1333
        %v1335 = vpop.f32.mrf.mxu0
        %v1336 = vadd.f32 0.0, %v1335
        %1337 = vmatmul.bf16.gmra.mxu0 %v1255
        %v1338 = vpop.f32.mrf.mxu0
        %v1339 = vadd.f32 0.0, %v1338
        %v1340 = vpop.f32.mrf.mxu0
        %v1341 = vadd.f32 0.0, %v1340
        %1342 = vmatmul.bf16.gmra.mxu0 %v1258
        %v1343 = vpop.f32.mrf.mxu0
        %v1344 = vadd.f32 0.0, %v1343
        %v1345 = vpop.f32.mrf.mxu0
        %v1346 = vadd.f32 0.0, %v1345
        %1347 = vmatmul.bf16.gmra.mxu0 %v1261
        %v1348 = vpop.f32.mrf.mxu0
        %v1349 = vadd.f32 0.0, %v1348
        %v1350 = vpop.f32.mrf.mxu0
        %v1351 = vadd.f32 0.0, %v1350
        %1352 = vmatmul.bf16.gmra.mxu0 %v1264
        %v1353 = vpop.f32.mrf.mxu0
        %v1354 = vadd.f32 0.0, %v1353
        %v1355 = vpop.f32.mrf.mxu0
        %v1356 = vadd.f32 0.0, %v1355
        %1357 = vdwg.mxu0
        %v1358 = vadd.f32 %v960, %v1279
        %v1359 = vadd.f32 %v962, %v1281
        %v1360 = vadd.f32 %v965, %v1284
        %v1361 = vadd.f32 %v967, %v1286
        %v1362 = vadd.f32 %v970, %v1289
        %v1363 = vadd.f32 %v972, %v1291
        %v1364 = vadd.f32 %v975, %v1294
        %v1365 = vadd.f32 %v977, %v1296
        %v1366 = vadd.f32 %v980, %v1299
        %v1367 = vadd.f32 %v982, %v1301
        %v1368 = vadd.f32 %v985, %v1304
        %v1369 = vadd.f32 %v987, %v1306
        %v1370 = vadd.f32 %v990, %v1309
        %v1371 = vadd.f32 %v992, %v1311
        %v1372 = vadd.f32 %v995, %v1314
        %v1373 = vadd.f32 %v997, %v1316
        %v1374 = vadd.f32 %v1000, %v1319
        %v1375 = vadd.f32 %v1002, %v1321
        %v1376 = vadd.f32 %v1005, %v1324
        %v1377 = vadd.f32 %v1007, %v1326
        %v1378 = vadd.f32 %v1010, %v1329
        %v1379 = vadd.f32 %v1012, %v1331
        %v1380 = vadd.f32 %v1015, %v1334
        %v1381 = vadd.f32 %v1017, %v1336
        %v1382 = vadd.f32 %v1020, %v1339
        %v1383 = vadd.f32 %v1022, %v1341
        %v1384 = vadd.f32 %v1025, %v1344
        %v1385 = vadd.f32 %v1027, %v1346
        %v1386 = vadd.f32 %v1030, %v1349
        %v1387 = vadd.f32 %v1032, %v1351
        %v1388 = vadd.f32 %v1035, %v1354
        %v1389 = vadd.f32 %v1037, %v1356
        %v1392 = vunpack.c.l.b16 %v227
        %v1393 = vunpack.c.l.b16 %v228
        %v1394 = vpack.c.b16 %v1393, %v1392
        %v1396 = vsel %vm677, %v1394, 0
        %v1399 = vsel %vm726, %v236, 0
        %1401 = vmatpush.bf16.msra.mxu0 0
        %1402 = vmatpush.bf16.msra.mxu0 0
        %1403 = vmatpush.bf16.msra.mxu0 0
        %1404 = vmatpush.bf16.msra.mxu0 0
        %1405 = vmatpush.bf16.msra.mxu0 0
        %1406 = vmatpush.bf16.msra.mxu0 0
        %1407 = vmatpush.bf16.msra.mxu0 0
        %1408 = vmatpush.bf16.msra.mxu0 %v1399
        %1409 = vmatmul.bf16.gmra.mxu0 %v903
        %v1410 = vpop.f32.mrf.mxu0
        %v1411 = vadd.f32 0.0, %v1410
        %v1412 = vpop.f32.mrf.mxu0
        %v1413 = vadd.f32 0.0, %v1412
        %1414 = vmatmul.bf16.gmra.mxu0 %v906
        %v1415 = vpop.f32.mrf.mxu0
        %v1416 = vadd.f32 0.0, %v1415
        %v1417 = vpop.f32.mrf.mxu0
        %v1418 = vadd.f32 0.0, %v1417
        %1419 = vmatmul.bf16.gmra.mxu0 %v909
        %v1420 = vpop.f32.mrf.mxu0
        %v1421 = vadd.f32 0.0, %v1420
        %v1422 = vpop.f32.mrf.mxu0
        %v1423 = vadd.f32 0.0, %v1422
        %1424 = vmatmul.bf16.gmra.mxu0 %v912
        %v1425 = vpop.f32.mrf.mxu0
        %v1426 = vadd.f32 0.0, %v1425
        %v1427 = vpop.f32.mrf.mxu0
        %v1428 = vadd.f32 0.0, %v1427
        %1429 = vmatmul.bf16.gmra.mxu0 %v915
        %v1430 = vpop.f32.mrf.mxu0
        %v1431 = vadd.f32 0.0, %v1430
        %v1432 = vpop.f32.mrf.mxu0
        %v1433 = vadd.f32 0.0, %v1432
        %1434 = vmatmul.bf16.gmra.mxu0 %v918
        %v1435 = vpop.f32.mrf.mxu0
        %v1436 = vadd.f32 0.0, %v1435
        %v1437 = vpop.f32.mrf.mxu0
        %v1438 = vadd.f32 0.0, %v1437
        %1439 = vmatmul.bf16.gmra.mxu0 %v921
        %v1440 = vpop.f32.mrf.mxu0
        %v1441 = vadd.f32 0.0, %v1440
        %v1442 = vpop.f32.mrf.mxu0
        %v1443 = vadd.f32 0.0, %v1442
        %1444 = vmatmul.bf16.gmra.mxu0 %v924
        %v1445 = vpop.f32.mrf.mxu0
        %v1446 = vadd.f32 0.0, %v1445
        %v1447 = vpop.f32.mrf.mxu0
        %v1448 = vadd.f32 0.0, %v1447
        %1449 = vmatmul.bf16.gmra.mxu0 %v927
        %v1450 = vpop.f32.mrf.mxu0
        %v1451 = vadd.f32 0.0, %v1450
        %v1452 = vpop.f32.mrf.mxu0
        %v1453 = vadd.f32 0.0, %v1452
        %1454 = vmatmul.bf16.gmra.mxu0 %v930
        %v1455 = vpop.f32.mrf.mxu0
        %v1456 = vadd.f32 0.0, %v1455
        %v1457 = vpop.f32.mrf.mxu0
        %v1458 = vadd.f32 0.0, %v1457
        %1459 = vmatmul.bf16.gmra.mxu0 %v933
        %v1460 = vpop.f32.mrf.mxu0
        %v1461 = vadd.f32 0.0, %v1460
        %v1462 = vpop.f32.mrf.mxu0
        %v1463 = vadd.f32 0.0, %v1462
        %1464 = vmatmul.bf16.gmra.mxu0 %v936
        %v1465 = vpop.f32.mrf.mxu0
        %v1466 = vadd.f32 0.0, %v1465
        %v1467 = vpop.f32.mrf.mxu0
        %v1468 = vadd.f32 0.0, %v1467
        %1469 = vmatmul.bf16.gmra.mxu0 %v939
        %v1470 = vpop.f32.mrf.mxu0
        %v1471 = vadd.f32 0.0, %v1470
        %v1472 = vpop.f32.mrf.mxu0
        %v1473 = vadd.f32 0.0, %v1472
        %1474 = vmatmul.bf16.gmra.mxu0 %v942
        %v1475 = vpop.f32.mrf.mxu0
        %v1476 = vadd.f32 0.0, %v1475
        %v1477 = vpop.f32.mrf.mxu0
        %v1478 = vadd.f32 0.0, %v1477
        %1479 = vmatmul.bf16.gmra.mxu0 %v945
        %v1480 = vpop.f32.mrf.mxu0
        %v1481 = vadd.f32 0.0, %v1480
        %v1482 = vpop.f32.mrf.mxu0
        %v1483 = vadd.f32 0.0, %v1482
        %1484 = vmatmul.bf16.gmra.mxu0 %v1396
        %v1485 = vpop.f32.mrf.mxu0
        %v1486 = vadd.f32 0.0, %v1485
        %v1487 = vpop.f32.mrf.mxu0
        %v1488 = vadd.f32 0.0, %v1487
        %1489 = vdwg.mxu0
        %v1490 = vadd.f32 %v1358, %v1411
        %v1491 = vadd.f32 %v1359, %v1413
        %v1492 = vadd.f32 %v1360, %v1416
        %v1493 = vadd.f32 %v1361, %v1418
        %v1494 = vadd.f32 %v1362, %v1421
        %v1495 = vadd.f32 %v1363, %v1423
        %v1496 = vadd.f32 %v1364, %v1426
        %v1497 = vadd.f32 %v1365, %v1428
        %v1498 = vadd.f32 %v1366, %v1431
        %v1499 = vadd.f32 %v1367, %v1433
        %v1500 = vadd.f32 %v1368, %v1436
        %v1501 = vadd.f32 %v1369, %v1438
        %v1502 = vadd.f32 %v1370, %v1441
        %v1503 = vadd.f32 %v1371, %v1443
        %v1504 = vadd.f32 %v1372, %v1446
        %v1505 = vadd.f32 %v1373, %v1448
        %v1506 = vadd.f32 %v1374, %v1451
        %v1507 = vadd.f32 %v1375, %v1453
        %v1508 = vadd.f32 %v1376, %v1456
        %v1509 = vadd.f32 %v1377, %v1458
        %v1510 = vadd.f32 %v1378, %v1461
        %v1511 = vadd.f32 %v1379, %v1463
        %v1512 = vadd.f32 %v1380, %v1466
        %v1513 = vadd.f32 %v1381, %v1468
        %v1514 = vadd.f32 %v1382, %v1471
        %v1515 = vadd.f32 %v1383, %v1473
        %v1516 = vadd.f32 %v1384, %v1476
        %v1517 = vadd.f32 %v1385, %v1478
        %v1518 = vadd.f32 %v1386, %v1481
        %v1519 = vadd.f32 %v1387, %v1483
        %v1520 = vadd.f32 %v1388, %v1486
        %v1521 = vadd.f32 %v1389, %v1488
        %v1523 = vshrl.u32 %v227, 16
        %v1525 = vrot.slane %v1523, 4
        %v1526 = vshll.u32 %v227, 16
        %v1528 = vrot.slane %v1526, 5
        %v1529 = vor.u32 %v1525, %v1528
        %v1530 = vrot.slane %v1529, 4
        %v1532 = vshll.u32 %v228, 16
        %v1534 = vrot.slane %v1532, 5
        %v1535 = vsel %vm244, %v1530, %v1534
        %v1536 = vshrl.u32 %v228, 16
        %v1538 = vrot.slane %v1536, 4
        %v1539 = vor.u32 %v1538, %v1534
        %v1540 = vrot.slane %v1539, 4
        %v1542 = vshll.u32 %v229, 16
        %v1544 = vrot.slane %v1542, 5
        %v1545 = vsel %vm244, %v1540, %v1544
        %v1546 = vunpack.c.l.b16 %v1535
        %v1547 = vunpack.c.l.b16 %v1545
        %v1548 = vpack.c.b16 %v1547, %v1546
        %v1550 = vsel %vm677, %v1548, 0
        %v1553 = vsel %vm726, %v237, 0
        %1555 = vmatpush.bf16.msra.mxu0 0
        %1556 = vmatpush.bf16.msra.mxu0 0
        %1557 = vmatpush.bf16.msra.mxu0 0
        %1558 = vmatpush.bf16.msra.mxu0 0
        %1559 = vmatpush.bf16.msra.mxu0 0
        %1560 = vmatpush.bf16.msra.mxu0 0
        %1561 = vmatpush.bf16.msra.mxu0 0
        %1562 = vmatpush.bf16.msra.mxu0 %v1553
        %1563 = vmatmul.bf16.gmra.mxu0 %v682
        %v1564 = vpop.f32.mrf.mxu0
        %v1565 = vadd.f32 0.0, %v1564
        %v1566 = vpop.f32.mrf.mxu0
        %v1567 = vadd.f32 0.0, %v1566
        %1568 = vmatmul.bf16.gmra.mxu0 %v685
        %v1569 = vpop.f32.mrf.mxu0
        %v1570 = vadd.f32 0.0, %v1569
        %v1571 = vpop.f32.mrf.mxu0
        %v1572 = vadd.f32 0.0, %v1571
        %1573 = vmatmul.bf16.gmra.mxu0 %v688
        %v1574 = vpop.f32.mrf.mxu0
        %v1575 = vadd.f32 0.0, %v1574
        %v1576 = vpop.f32.mrf.mxu0
        %v1577 = vadd.f32 0.0, %v1576
        %1578 = vmatmul.bf16.gmra.mxu0 %v691
        %v1579 = vpop.f32.mrf.mxu0
        %v1580 = vadd.f32 0.0, %v1579
        %v1581 = vpop.f32.mrf.mxu0
        %v1582 = vadd.f32 0.0, %v1581
        %1583 = vmatmul.bf16.gmra.mxu0 %v694
        %v1584 = vpop.f32.mrf.mxu0
        %v1585 = vadd.f32 0.0, %v1584
        %v1586 = vpop.f32.mrf.mxu0
        %v1587 = vadd.f32 0.0, %v1586
        %1588 = vmatmul.bf16.gmra.mxu0 %v697
        %v1589 = vpop.f32.mrf.mxu0
        %v1590 = vadd.f32 0.0, %v1589
        %v1591 = vpop.f32.mrf.mxu0
        %v1592 = vadd.f32 0.0, %v1591
        %1593 = vmatmul.bf16.gmra.mxu0 %v700
        %v1594 = vpop.f32.mrf.mxu0
        %v1595 = vadd.f32 0.0, %v1594
        %v1596 = vpop.f32.mrf.mxu0
        %v1597 = vadd.f32 0.0, %v1596
        %1598 = vmatmul.bf16.gmra.mxu0 %v703
        %v1599 = vpop.f32.mrf.mxu0
        %v1600 = vadd.f32 0.0, %v1599
        %v1601 = vpop.f32.mrf.mxu0
        %v1602 = vadd.f32 0.0, %v1601
        %1603 = vmatmul.bf16.gmra.mxu0 %v706
        %v1604 = vpop.f32.mrf.mxu0
        %v1605 = vadd.f32 0.0, %v1604
        %v1606 = vpop.f32.mrf.mxu0
        %v1607 = vadd.f32 0.0, %v1606
        %1608 = vmatmul.bf16.gmra.mxu0 %v709
        %v1609 = vpop.f32.mrf.mxu0
        %v1610 = vadd.f32 0.0, %v1609
        %v1611 = vpop.f32.mrf.mxu0
        %v1612 = vadd.f32 0.0, %v1611
        %1613 = vmatmul.bf16.gmra.mxu0 %v712
        %v1614 = vpop.f32.mrf.mxu0
        %v1615 = vadd.f32 0.0, %v1614
        %v1616 = vpop.f32.mrf.mxu0
        %v1617 = vadd.f32 0.0, %v1616
        %1618 = vmatmul.bf16.gmra.mxu0 %v715
        %v1619 = vpop.f32.mrf.mxu0
        %v1620 = vadd.f32 0.0, %v1619
        %v1621 = vpop.f32.mrf.mxu0
        %v1622 = vadd.f32 0.0, %v1621
        %1623 = vmatmul.bf16.gmra.mxu0 %v718
        %v1624 = vpop.f32.mrf.mxu0
        %v1625 = vadd.f32 0.0, %v1624
        %v1626 = vpop.f32.mrf.mxu0
        %v1627 = vadd.f32 0.0, %v1626
        %1628 = vmatmul.bf16.gmra.mxu0 %v721
        %v1629 = vpop.f32.mrf.mxu0
        %v1630 = vadd.f32 0.0, %v1629
        %v1631 = vpop.f32.mrf.mxu0
        %v1632 = vadd.f32 0.0, %v1631
        %1633 = vmatmul.bf16.gmra.mxu0 %v724
        %v1634 = vpop.f32.mrf.mxu0
        %v1635 = vadd.f32 0.0, %v1634
        %v1636 = vpop.f32.mrf.mxu0
        %v1637 = vadd.f32 0.0, %v1636
        %1638 = vmatmul.bf16.gmra.mxu0 %v1550
        %v1639 = vpop.f32.mrf.mxu0
        %v1640 = vadd.f32 0.0, %v1639
        %v1641 = vpop.f32.mrf.mxu0
        %v1642 = vadd.f32 0.0, %v1641
        %1643 = vdwg.mxu0
        %v1644 = vadd.f32 %v1490, %v1565
        %v1645 = vadd.f32 %v1491, %v1567
        %v1646 = vadd.f32 %v1492, %v1570
        %v1647 = vadd.f32 %v1493, %v1572
        %v1648 = vadd.f32 %v1494, %v1575
        %v1649 = vadd.f32 %v1495, %v1577
        %v1650 = vadd.f32 %v1496, %v1580
        %v1651 = vadd.f32 %v1497, %v1582
        %v1652 = vadd.f32 %v1498, %v1585
        %v1653 = vadd.f32 %v1499, %v1587
        %v1654 = vadd.f32 %v1500, %v1590
        %v1655 = vadd.f32 %v1501, %v1592
        %v1656 = vadd.f32 %v1502, %v1595
        %v1657 = vadd.f32 %v1503, %v1597
        %v1658 = vadd.f32 %v1504, %v1600
        %v1659 = vadd.f32 %v1505, %v1602
        %v1660 = vadd.f32 %v1506, %v1605
        %v1661 = vadd.f32 %v1507, %v1607
        %v1662 = vadd.f32 %v1508, %v1610
        %v1663 = vadd.f32 %v1509, %v1612
        %v1664 = vadd.f32 %v1510, %v1615
        %v1665 = vadd.f32 %v1511, %v1617
        %v1666 = vadd.f32 %v1512, %v1620
        %v1667 = vadd.f32 %v1513, %v1622
        %v1668 = vadd.f32 %v1514, %v1625
        %v1669 = vadd.f32 %v1515, %v1627
        %v1670 = vadd.f32 %v1516, %v1630
        %v1671 = vadd.f32 %v1517, %v1632
        %v1672 = vadd.f32 %v1518, %v1635
        %v1673 = vadd.f32 %v1519, %v1637
        %v1674 = vadd.f32 %v1520, %v1640
        %v1675 = vadd.f32 %v1521, %v1642
        %v1677 = vrot.slane %v227, 5
        %v1678 = vrot.slane %v1677, 4
        %v1679 = vrot.slane %v228, 5
        %v1680 = vsel %vm1057, %v1678, %v1679
        %v1681 = vrot.slane %v1679, 4
        %v1682 = vrot.slane %v229, 5
        %v1683 = vsel %vm1057, %v1681, %v1682
        %v1684 = vunpack.c.l.b16 %v1680
        %v1685 = vunpack.c.l.b16 %v1683
        %v1686 = vpack.c.b16 %v1685, %v1684
        %v1688 = vsel %vm677, %v1686, 0
        %v1691 = vsel %vm726, %v238, 0
        %1693 = vmatpush.bf16.msra.mxu0 0
        %1694 = vmatpush.bf16.msra.mxu0 0
        %1695 = vmatpush.bf16.msra.mxu0 0
        %1696 = vmatpush.bf16.msra.mxu0 0
        %1697 = vmatpush.bf16.msra.mxu0 0
        %1698 = vmatpush.bf16.msra.mxu0 0
        %1699 = vmatpush.bf16.msra.mxu0 0
        %1700 = vmatpush.bf16.msra.mxu0 %v1691
        %1701 = vmatmul.bf16.gmra.mxu0 %v1222
        %v1702 = vpop.f32.mrf.mxu0
        %v1703 = vadd.f32 0.0, %v1702
        %v1704 = vpop.f32.mrf.mxu0
        %v1705 = vadd.f32 0.0, %v1704
        %1706 = vmatmul.bf16.gmra.mxu0 %v1225
        %v1707 = vpop.f32.mrf.mxu0
        %v1708 = vadd.f32 0.0, %v1707
        %v1709 = vpop.f32.mrf.mxu0
        %v1710 = vadd.f32 0.0, %v1709
        %1711 = vmatmul.bf16.gmra.mxu0 %v1228
        %v1712 = vpop.f32.mrf.mxu0
        %v1713 = vadd.f32 0.0, %v1712
        %v1714 = vpop.f32.mrf.mxu0
        %v1715 = vadd.f32 0.0, %v1714
        %1716 = vmatmul.bf16.gmra.mxu0 %v1231
        %v1717 = vpop.f32.mrf.mxu0
        %v1718 = vadd.f32 0.0, %v1717
        %v1719 = vpop.f32.mrf.mxu0
        %v1720 = vadd.f32 0.0, %v1719
        %1721 = vmatmul.bf16.gmra.mxu0 %v1234
        %v1722 = vpop.f32.mrf.mxu0
        %v1723 = vadd.f32 0.0, %v1722
        %v1724 = vpop.f32.mrf.mxu0
        %v1725 = vadd.f32 0.0, %v1724
        %1726 = vmatmul.bf16.gmra.mxu0 %v1237
        %v1727 = vpop.f32.mrf.mxu0
        %v1728 = vadd.f32 0.0, %v1727
        %v1729 = vpop.f32.mrf.mxu0
        %v1730 = vadd.f32 0.0, %v1729
        %1731 = vmatmul.bf16.gmra.mxu0 %v1240
        %v1732 = vpop.f32.mrf.mxu0
        %v1733 = vadd.f32 0.0, %v1732
        %v1734 = vpop.f32.mrf.mxu0
        %v1735 = vadd.f32 0.0, %v1734
        %1736 = vmatmul.bf16.gmra.mxu0 %v1243
        %v1737 = vpop.f32.mrf.mxu0
        %v1738 = vadd.f32 0.0, %v1737
        %v1739 = vpop.f32.mrf.mxu0
        %v1740 = vadd.f32 0.0, %v1739
        %1741 = vmatmul.bf16.gmra.mxu0 %v1246
        %v1742 = vpop.f32.mrf.mxu0
        %v1743 = vadd.f32 0.0, %v1742
        %v1744 = vpop.f32.mrf.mxu0
        %v1745 = vadd.f32 0.0, %v1744
        %1746 = vmatmul.bf16.gmra.mxu0 %v1249
        %v1747 = vpop.f32.mrf.mxu0
        %v1748 = vadd.f32 0.0, %v1747
        %v1749 = vpop.f32.mrf.mxu0
        %v1750 = vadd.f32 0.0, %v1749
        %1751 = vmatmul.bf16.gmra.mxu0 %v1252
        %v1752 = vpop.f32.mrf.mxu0
        %v1753 = vadd.f32 0.0, %v1752
        %v1754 = vpop.f32.mrf.mxu0
        %v1755 = vadd.f32 0.0, %v1754
        %1756 = vmatmul.bf16.gmra.mxu0 %v1255
        %v1757 = vpop.f32.mrf.mxu0
        %v1758 = vadd.f32 0.0, %v1757
        %v1759 = vpop.f32.mrf.mxu0
        %v1760 = vadd.f32 0.0, %v1759
        %1761 = vmatmul.bf16.gmra.mxu0 %v1258
        %v1762 = vpop.f32.mrf.mxu0
        %v1763 = vadd.f32 0.0, %v1762
        %v1764 = vpop.f32.mrf.mxu0
        %v1765 = vadd.f32 0.0, %v1764
        %1766 = vmatmul.bf16.gmra.mxu0 %v1261
        %v1767 = vpop.f32.mrf.mxu0
        %v1768 = vadd.f32 0.0, %v1767
        %v1769 = vpop.f32.mrf.mxu0
        %v1770 = vadd.f32 0.0, %v1769
        %1771 = vmatmul.bf16.gmra.mxu0 %v1264
        %v1772 = vpop.f32.mrf.mxu0
        %v1773 = vadd.f32 0.0, %v1772
        %v1774 = vpop.f32.mrf.mxu0
        %v1775 = vadd.f32 0.0, %v1774
        %1776 = vmatmul.bf16.gmra.mxu0 %v1688
        %v1777 = vpop.f32.mrf.mxu0
        %v1778 = vadd.f32 0.0, %v1777
        %v1779 = vpop.f32.mrf.mxu0
        %v1780 = vadd.f32 0.0, %v1779
        %1781 = vdwg.mxu0
        %v1782 = vadd.f32 %v1644, %v1703
        %v1783 = vadd.f32 %v1645, %v1705
        %v1784 = vadd.f32 %v1646, %v1708
        %v1785 = vadd.f32 %v1647, %v1710
        %v1786 = vadd.f32 %v1648, %v1713
        %v1787 = vadd.f32 %v1649, %v1715
        %v1788 = vadd.f32 %v1650, %v1718
        %v1789 = vadd.f32 %v1651, %v1720
        %v1790 = vadd.f32 %v1652, %v1723
        %v1791 = vadd.f32 %v1653, %v1725
        %v1792 = vadd.f32 %v1654, %v1728
        %v1793 = vadd.f32 %v1655, %v1730
        %v1794 = vadd.f32 %v1656, %v1733
        %v1795 = vadd.f32 %v1657, %v1735
        %v1796 = vadd.f32 %v1658, %v1738
        %v1797 = vadd.f32 %v1659, %v1740
        %v1798 = vadd.f32 %v1660, %v1743
        %v1799 = vadd.f32 %v1661, %v1745
        %v1800 = vadd.f32 %v1662, %v1748
        %v1801 = vadd.f32 %v1663, %v1750
        %v1802 = vadd.f32 %v1664, %v1753
        %v1803 = vadd.f32 %v1665, %v1755
        %v1804 = vadd.f32 %v1666, %v1758
        %v1805 = vadd.f32 %v1667, %v1760
        %v1806 = vadd.f32 %v1668, %v1763
        %v1807 = vadd.f32 %v1669, %v1765
        %v1808 = vadd.f32 %v1670, %v1768
        %v1809 = vadd.f32 %v1671, %v1770
        %v1810 = vadd.f32 %v1672, %v1773
        %v1811 = vadd.f32 %v1673, %v1775
        %v1812 = vadd.f32 %v1674, %v1778
        %v1813 = vadd.f32 %v1675, %v1780
        %v1816 = vunpack.c.l.b16 %v230
        %v1817 = vunpack.c.l.b16 %v231
        %v1818 = vpack.c.b16 %v1817, %v1816
        %v1820 = vsel %vm677, %v1818, 0
        %v1823 = vsel %vm726, %v239, 0
        %1825 = vmatpush.bf16.msra.mxu0 0
        %1826 = vmatpush.bf16.msra.mxu0 0
        %1827 = vmatpush.bf16.msra.mxu0 0
        %1828 = vmatpush.bf16.msra.mxu0 0
        %1829 = vmatpush.bf16.msra.mxu0 0
        %1830 = vmatpush.bf16.msra.mxu0 0
        %1831 = vmatpush.bf16.msra.mxu0 0
        %1832 = vmatpush.bf16.msra.mxu0 %v1823
        %1833 = vmatmul.bf16.gmra.mxu0 %v906
        %v1834 = vpop.f32.mrf.mxu0
        %v1835 = vadd.f32 0.0, %v1834
        %v1836 = vpop.f32.mrf.mxu0
        %v1837 = vadd.f32 0.0, %v1836
        %1838 = vmatmul.bf16.gmra.mxu0 %v909
        %v1839 = vpop.f32.mrf.mxu0
        %v1840 = vadd.f32 0.0, %v1839
        %v1841 = vpop.f32.mrf.mxu0
        %v1842 = vadd.f32 0.0, %v1841
        %1843 = vmatmul.bf16.gmra.mxu0 %v912
        %v1844 = vpop.f32.mrf.mxu0
        %v1845 = vadd.f32 0.0, %v1844
        %v1846 = vpop.f32.mrf.mxu0
        %v1847 = vadd.f32 0.0, %v1846
        %1848 = vmatmul.bf16.gmra.mxu0 %v915
        %v1849 = vpop.f32.mrf.mxu0
        %v1850 = vadd.f32 0.0, %v1849
        %v1851 = vpop.f32.mrf.mxu0
        %v1852 = vadd.f32 0.0, %v1851
        %1853 = vmatmul.bf16.gmra.mxu0 %v918
        %v1854 = vpop.f32.mrf.mxu0
        %v1855 = vadd.f32 0.0, %v1854
        %v1856 = vpop.f32.mrf.mxu0
        %v1857 = vadd.f32 0.0, %v1856
        %1858 = vmatmul.bf16.gmra.mxu0 %v921
        %v1859 = vpop.f32.mrf.mxu0
        %v1860 = vadd.f32 0.0, %v1859
        %v1861 = vpop.f32.mrf.mxu0
        %v1862 = vadd.f32 0.0, %v1861
        %1863 = vmatmul.bf16.gmra.mxu0 %v924
        %v1864 = vpop.f32.mrf.mxu0
        %v1865 = vadd.f32 0.0, %v1864
        %v1866 = vpop.f32.mrf.mxu0
        %v1867 = vadd.f32 0.0, %v1866
        %1868 = vmatmul.bf16.gmra.mxu0 %v927
        %v1869 = vpop.f32.mrf.mxu0
        %v1870 = vadd.f32 0.0, %v1869
        %v1871 = vpop.f32.mrf.mxu0
        %v1872 = vadd.f32 0.0, %v1871
        %1873 = vmatmul.bf16.gmra.mxu0 %v930
        %v1874 = vpop.f32.mrf.mxu0
        %v1875 = vadd.f32 0.0, %v1874
        %v1876 = vpop.f32.mrf.mxu0
        %v1877 = vadd.f32 0.0, %v1876
        %1878 = vmatmul.bf16.gmra.mxu0 %v933
        %v1879 = vpop.f32.mrf.mxu0
        %v1880 = vadd.f32 0.0, %v1879
        %v1881 = vpop.f32.mrf.mxu0
        %v1882 = vadd.f32 0.0, %v1881
        %1883 = vmatmul.bf16.gmra.mxu0 %v936
        %v1884 = vpop.f32.mrf.mxu0
        %v1885 = vadd.f32 0.0, %v1884
        %v1886 = vpop.f32.mrf.mxu0
        %v1887 = vadd.f32 0.0, %v1886
        %1888 = vmatmul.bf16.gmra.mxu0 %v939
        %v1889 = vpop.f32.mrf.mxu0
        %v1890 = vadd.f32 0.0, %v1889
        %v1891 = vpop.f32.mrf.mxu0
        %v1892 = vadd.f32 0.0, %v1891
        %1893 = vmatmul.bf16.gmra.mxu0 %v942
        %v1894 = vpop.f32.mrf.mxu0
        %v1895 = vadd.f32 0.0, %v1894
        %v1896 = vpop.f32.mrf.mxu0
        %v1897 = vadd.f32 0.0, %v1896
        %1898 = vmatmul.bf16.gmra.mxu0 %v945
        %v1899 = vpop.f32.mrf.mxu0
        %v1900 = vadd.f32 0.0, %v1899
        %v1901 = vpop.f32.mrf.mxu0
        %v1902 = vadd.f32 0.0, %v1901
        %1903 = vmatmul.bf16.gmra.mxu0 %v1396
        %v1904 = vpop.f32.mrf.mxu0
        %v1905 = vadd.f32 0.0, %v1904
        %v1906 = vpop.f32.mrf.mxu0
        %v1907 = vadd.f32 0.0, %v1906
        %1908 = vmatmul.bf16.gmra.mxu0 %v1820
        %v1909 = vpop.f32.mrf.mxu0
        %v1910 = vadd.f32 0.0, %v1909
        %v1911 = vpop.f32.mrf.mxu0
        %v1912 = vadd.f32 0.0, %v1911
        %1913 = vdwg.mxu0
        %v1914 = vadd.f32 %v1782, %v1835
        %v1915 = vadd.f32 %v1783, %v1837
        %v1916 = vadd.f32 %v1784, %v1840
        %v1917 = vadd.f32 %v1785, %v1842
        %v1918 = vadd.f32 %v1786, %v1845
        %v1919 = vadd.f32 %v1787, %v1847
        %v1920 = vadd.f32 %v1788, %v1850
        %v1921 = vadd.f32 %v1789, %v1852
        %v1922 = vadd.f32 %v1790, %v1855
        %v1923 = vadd.f32 %v1791, %v1857
        %v1924 = vadd.f32 %v1792, %v1860
        %v1925 = vadd.f32 %v1793, %v1862
        %v1926 = vadd.f32 %v1794, %v1865
        %v1927 = vadd.f32 %v1795, %v1867
        %v1928 = vadd.f32 %v1796, %v1870
        %v1929 = vadd.f32 %v1797, %v1872
        %v1930 = vadd.f32 %v1798, %v1875
        %v1931 = vadd.f32 %v1799, %v1877
        %v1932 = vadd.f32 %v1800, %v1880
        %v1933 = vadd.f32 %v1801, %v1882
        %v1934 = vadd.f32 %v1802, %v1885
        %v1935 = vadd.f32 %v1803, %v1887
        %v1936 = vadd.f32 %v1804, %v1890
        %v1937 = vadd.f32 %v1805, %v1892
        %v1938 = vadd.f32 %v1806, %v1895
        %v1939 = vadd.f32 %v1807, %v1897
        %v1940 = vadd.f32 %v1808, %v1900
        %v1941 = vadd.f32 %v1809, %v1902
        %v1942 = vadd.f32 %v1810, %v1905
        %v1943 = vadd.f32 %v1811, %v1907
        %v1944 = vadd.f32 %v1812, %v1910
        %v1945 = vadd.f32 %v1813, %v1912
        %v1947 = vshrl.u32 %v230, 16
        %v1949 = vrot.slane %v1947, 4
        %v1950 = vshll.u32 %v230, 16
        %v1952 = vrot.slane %v1950, 5
        %v1953 = vor.u32 %v1949, %v1952
        %v1954 = vrot.slane %v1953, 4
        %v1956 = vshll.u32 %v231, 16
        %v1958 = vrot.slane %v1956, 5
        %v1959 = vsel %vm244, %v1954, %v1958
        %v1960 = vshrl.u32 %v231, 16
        %v1962 = vrot.slane %v1960, 4
        %v1963 = vor.u32 %v1962, %v1958
        %v1964 = vrot.slane %v1963, 4
        %v1966 = vshll.u32 %v232, 16
        %v1968 = vrot.slane %v1966, 5
        %v1969 = vsel %vm244, %v1964, %v1968
        %v1970 = vunpack.c.l.b16 %v1959
        %v1971 = vunpack.c.l.b16 %v1969
        %v1972 = vpack.c.b16 %v1971, %v1970
        %v1974 = vsel %vm677, %v1972, 0
        %v1977 = vsel %vm726, %v240, 0
        %1979 = vmatpush.bf16.msra.mxu0 0
        %1980 = vmatpush.bf16.msra.mxu0 0
        %1981 = vmatpush.bf16.msra.mxu0 0
        %1982 = vmatpush.bf16.msra.mxu0 0
        %1983 = vmatpush.bf16.msra.mxu0 0
        %1984 = vmatpush.bf16.msra.mxu0 0
        %1985 = vmatpush.bf16.msra.mxu0 0
        %1986 = vmatpush.bf16.msra.mxu0 %v1977
        %1987 = vmatmul.bf16.gmra.mxu0 %v685
        %v1988 = vpop.f32.mrf.mxu0
        %v1989 = vadd.f32 0.0, %v1988
        %v1990 = vpop.f32.mrf.mxu0
        %v1991 = vadd.f32 0.0, %v1990
        %1992 = vmatmul.bf16.gmra.mxu0 %v688
        %v1993 = vpop.f32.mrf.mxu0
        %v1994 = vadd.f32 0.0, %v1993
        %v1995 = vpop.f32.mrf.mxu0
        %v1996 = vadd.f32 0.0, %v1995
        %1997 = vmatmul.bf16.gmra.mxu0 %v691
        %v1998 = vpop.f32.mrf.mxu0
        %v1999 = vadd.f32 0.0, %v1998
        %v2000 = vpop.f32.mrf.mxu0
        %v2001 = vadd.f32 0.0, %v2000
        %2002 = vmatmul.bf16.gmra.mxu0 %v694
        %v2003 = vpop.f32.mrf.mxu0
        %v2004 = vadd.f32 0.0, %v2003
        %v2005 = vpop.f32.mrf.mxu0
        %v2006 = vadd.f32 0.0, %v2005
        %2007 = vmatmul.bf16.gmra.mxu0 %v697
        %v2008 = vpop.f32.mrf.mxu0
        %v2009 = vadd.f32 0.0, %v2008
        %v2010 = vpop.f32.mrf.mxu0
        %v2011 = vadd.f32 0.0, %v2010
        %2012 = vmatmul.bf16.gmra.mxu0 %v700
        %v2013 = vpop.f32.mrf.mxu0
        %v2014 = vadd.f32 0.0, %v2013
        %v2015 = vpop.f32.mrf.mxu0
        %v2016 = vadd.f32 0.0, %v2015
        %2017 = vmatmul.bf16.gmra.mxu0 %v703
        %v2018 = vpop.f32.mrf.mxu0
        %v2019 = vadd.f32 0.0, %v2018
        %v2020 = vpop.f32.mrf.mxu0
        %v2021 = vadd.f32 0.0, %v2020
        %2022 = vmatmul.bf16.gmra.mxu0 %v706
        %v2023 = vpop.f32.mrf.mxu0
        %v2024 = vadd.f32 0.0, %v2023
        %v2025 = vpop.f32.mrf.mxu0
        %v2026 = vadd.f32 0.0, %v2025
        %2027 = vmatmul.bf16.gmra.mxu0 %v709
        %v2028 = vpop.f32.mrf.mxu0
        %v2029 = vadd.f32 0.0, %v2028
        %v2030 = vpop.f32.mrf.mxu0
        %v2031 = vadd.f32 0.0, %v2030
        %2032 = vmatmul.bf16.gmra.mxu0 %v712
        %v2033 = vpop.f32.mrf.mxu0
        %v2034 = vadd.f32 0.0, %v2033
        %v2035 = vpop.f32.mrf.mxu0
        %v2036 = vadd.f32 0.0, %v2035
        %2037 = vmatmul.bf16.gmra.mxu0 %v715
        %v2038 = vpop.f32.mrf.mxu0
        %v2039 = vadd.f32 0.0, %v2038
        %v2040 = vpop.f32.mrf.mxu0
        %v2041 = vadd.f32 0.0, %v2040
        %2042 = vmatmul.bf16.gmra.mxu0 %v718
        %v2043 = vpop.f32.mrf.mxu0
        %v2044 = vadd.f32 0.0, %v2043
        %v2045 = vpop.f32.mrf.mxu0
        %v2046 = vadd.f32 0.0, %v2045
        %2047 = vmatmul.bf16.gmra.mxu0 %v721
        %v2048 = vpop.f32.mrf.mxu0
        %v2049 = vadd.f32 0.0, %v2048
        %v2050 = vpop.f32.mrf.mxu0
        %v2051 = vadd.f32 0.0, %v2050
        %2052 = vmatmul.bf16.gmra.mxu0 %v724
        %v2053 = vpop.f32.mrf.mxu0
        %v2054 = vadd.f32 0.0, %v2053
        %v2055 = vpop.f32.mrf.mxu0
        %v2056 = vadd.f32 0.0, %v2055
        %2057 = vmatmul.bf16.gmra.mxu0 %v1550
        %v2058 = vpop.f32.mrf.mxu0
        %v2059 = vadd.f32 0.0, %v2058
        %v2060 = vpop.f32.mrf.mxu0
        %v2061 = vadd.f32 0.0, %v2060
        %2062 = vmatmul.bf16.gmra.mxu0 %v1974
        %v2063 = vpop.f32.mrf.mxu0
        %v2064 = vadd.f32 0.0, %v2063
        %v2065 = vpop.f32.mrf.mxu0
        %v2066 = vadd.f32 0.0, %v2065
        %2067 = vdwg.mxu0
        %v2068 = vadd.f32 %v1914, %v1989
        %v2069 = vadd.f32 %v1915, %v1991
        %v2070 = vadd.f32 %v1916, %v1994
        %v2071 = vadd.f32 %v1917, %v1996
        %v2072 = vadd.f32 %v1918, %v1999
        %v2073 = vadd.f32 %v1919, %v2001
        %v2074 = vadd.f32 %v1920, %v2004
        %v2075 = vadd.f32 %v1921, %v2006
        %v2076 = vadd.f32 %v1922, %v2009
        %v2077 = vadd.f32 %v1923, %v2011
        %v2078 = vadd.f32 %v1924, %v2014
        %v2079 = vadd.f32 %v1925, %v2016
        %v2080 = vadd.f32 %v1926, %v2019
        %v2081 = vadd.f32 %v1927, %v2021
        %v2082 = vadd.f32 %v1928, %v2024
        %v2083 = vadd.f32 %v1929, %v2026
        %v2084 = vadd.f32 %v1930, %v2029
        %v2085 = vadd.f32 %v1931, %v2031
        %v2086 = vadd.f32 %v1932, %v2034
        %v2087 = vadd.f32 %v1933, %v2036
        %v2088 = vadd.f32 %v1934, %v2039
        %v2089 = vadd.f32 %v1935, %v2041
        %v2090 = vadd.f32 %v1936, %v2044
        %v2091 = vadd.f32 %v1937, %v2046
        %v2092 = vadd.f32 %v1938, %v2049
        %v2093 = vadd.f32 %v1939, %v2051
        %v2094 = vadd.f32 %v1940, %v2054
        %v2095 = vadd.f32 %v1941, %v2056
        %v2096 = vadd.f32 %v1942, %v2059
        %v2097 = vadd.f32 %v1943, %v2061
        %v2098 = vadd.f32 %v1944, %v2064
        %v2099 = vadd.f32 %v1945, %v2066
        %v2101 = vrot.slane %v230, 5
        %v2102 = vrot.slane %v2101, 4
        %v2103 = vrot.slane %v231, 5
        %v2104 = vsel %vm1057, %v2102, %v2103
        %v2105 = vrot.slane %v2103, 4
        %v2106 = vrot.slane %v232, 5
        %v2107 = vsel %vm1057, %v2105, %v2106
        %v2108 = vunpack.c.l.b16 %v2104
        %v2109 = vunpack.c.l.b16 %v2107
        %v2110 = vpack.c.b16 %v2109, %v2108
        %v2112 = vsel %vm677, %v2110, 0
        %v2115 = vsel %vm726, %v241, 0
        %2117 = vmatpush.bf16.msra.mxu0 0
        %2118 = vmatpush.bf16.msra.mxu0 0
        %2119 = vmatpush.bf16.msra.mxu0 0
        %2120 = vmatpush.bf16.msra.mxu0 0
        %2121 = vmatpush.bf16.msra.mxu0 0
        %2122 = vmatpush.bf16.msra.mxu0 0
        %2123 = vmatpush.bf16.msra.mxu0 0
        %2124 = vmatpush.bf16.msra.mxu0 %v2115
        %2125 = vmatmul.bf16.gmra.mxu0 %v1225
        %v2126 = vpop.f32.mrf.mxu0
        %v2127 = vadd.f32 0.0, %v2126
        %v2128 = vpop.f32.mrf.mxu0
        %v2129 = vadd.f32 0.0, %v2128
        %2130 = vmatmul.bf16.gmra.mxu0 %v1228
        %v2131 = vpop.f32.mrf.mxu0
        %v2132 = vadd.f32 0.0, %v2131
        %v2133 = vpop.f32.mrf.mxu0
        %v2134 = vadd.f32 0.0, %v2133
        %2135 = vmatmul.bf16.gmra.mxu0 %v1231
        %v2136 = vpop.f32.mrf.mxu0
        %v2137 = vadd.f32 0.0, %v2136
        %v2138 = vpop.f32.mrf.mxu0
        %v2139 = vadd.f32 0.0, %v2138
        %2140 = vmatmul.bf16.gmra.mxu0 %v1234
        %v2141 = vpop.f32.mrf.mxu0
        %v2142 = vadd.f32 0.0, %v2141
        %v2143 = vpop.f32.mrf.mxu0
        %v2144 = vadd.f32 0.0, %v2143
        %2145 = vmatmul.bf16.gmra.mxu0 %v1237
        %v2146 = vpop.f32.mrf.mxu0
        %v2147 = vadd.f32 0.0, %v2146
        %v2148 = vpop.f32.mrf.mxu0
        %v2149 = vadd.f32 0.0, %v2148
        %2150 = vmatmul.bf16.gmra.mxu0 %v1240
        %v2151 = vpop.f32.mrf.mxu0
        %v2152 = vadd.f32 0.0, %v2151
        %v2153 = vpop.f32.mrf.mxu0
        %v2154 = vadd.f32 0.0, %v2153
        %2155 = vmatmul.bf16.gmra.mxu0 %v1243
        %v2156 = vpop.f32.mrf.mxu0
        %v2157 = vadd.f32 0.0, %v2156
        %v2158 = vpop.f32.mrf.mxu0
        %v2159 = vadd.f32 0.0, %v2158
        %2160 = vmatmul.bf16.gmra.mxu0 %v1246
        %v2161 = vpop.f32.mrf.mxu0
        %v2162 = vadd.f32 0.0, %v2161
        %v2163 = vpop.f32.mrf.mxu0
        %v2164 = vadd.f32 0.0, %v2163
        %2165 = vmatmul.bf16.gmra.mxu0 %v1249
        %v2166 = vpop.f32.mrf.mxu0
        %v2167 = vadd.f32 0.0, %v2166
        %v2168 = vpop.f32.mrf.mxu0
        %v2169 = vadd.f32 0.0, %v2168
        %2170 = vmatmul.bf16.gmra.mxu0 %v1252
        %v2171 = vpop.f32.mrf.mxu0
        %v2172 = vadd.f32 0.0, %v2171
        %v2173 = vpop.f32.mrf.mxu0
        %v2174 = vadd.f32 0.0, %v2173
        %2175 = vmatmul.bf16.gmra.mxu0 %v1255
        %v2176 = vpop.f32.mrf.mxu0
        %v2177 = vadd.f32 0.0, %v2176
        %v2178 = vpop.f32.mrf.mxu0
        %v2179 = vadd.f32 0.0, %v2178
        %2180 = vmatmul.bf16.gmra.mxu0 %v1258
        %v2181 = vpop.f32.mrf.mxu0
        %v2182 = vadd.f32 0.0, %v2181
        %v2183 = vpop.f32.mrf.mxu0
        %v2184 = vadd.f32 0.0, %v2183
        %2185 = vmatmul.bf16.gmra.mxu0 %v1261
        %v2186 = vpop.f32.mrf.mxu0
        %v2187 = vadd.f32 0.0, %v2186
        %v2188 = vpop.f32.mrf.mxu0
        %v2189 = vadd.f32 0.0, %v2188
        %2190 = vmatmul.bf16.gmra.mxu0 %v1264
        %v2191 = vpop.f32.mrf.mxu0
        %v2192 = vadd.f32 0.0, %v2191
        %v2193 = vpop.f32.mrf.mxu0
        %v2194 = vadd.f32 0.0, %v2193
        %2195 = vmatmul.bf16.gmra.mxu0 %v1688
        %v2196 = vpop.f32.mrf.mxu0
        %v2197 = vadd.f32 0.0, %v2196
        %v2198 = vpop.f32.mrf.mxu0
        %v2199 = vadd.f32 0.0, %v2198
        %2200 = vmatmul.bf16.gmra.mxu0 %v2112
        %v2201 = vpop.f32.mrf.mxu0
        %v2202 = vadd.f32 0.0, %v2201
        %v2203 = vpop.f32.mrf.mxu0
        %v2204 = vadd.f32 0.0, %v2203
        %2205 = vdwg.mxu0
        %v2206 = vadd.f32 %v2068, %v2127
        %v2207 = vadd.f32 %v2069, %v2129
        %v2208 = vadd.f32 %v2070, %v2132
        %v2209 = vadd.f32 %v2071, %v2134
        %v2210 = vadd.f32 %v2072, %v2137
        %v2211 = vadd.f32 %v2073, %v2139
        %v2212 = vadd.f32 %v2074, %v2142
        %v2213 = vadd.f32 %v2075, %v2144
        %v2214 = vadd.f32 %v2076, %v2147
        %v2215 = vadd.f32 %v2077, %v2149
        %v2216 = vadd.f32 %v2078, %v2152
        %v2217 = vadd.f32 %v2079, %v2154
        %v2218 = vadd.f32 %v2080, %v2157
        %v2219 = vadd.f32 %v2081, %v2159
        %v2220 = vadd.f32 %v2082, %v2162
        %v2221 = vadd.f32 %v2083, %v2164
        %v2222 = vadd.f32 %v2084, %v2167
        %v2223 = vadd.f32 %v2085, %v2169
        %v2224 = vadd.f32 %v2086, %v2172
        %v2225 = vadd.f32 %v2087, %v2174
        %v2226 = vadd.f32 %v2088, %v2177
        %v2227 = vadd.f32 %v2089, %v2179
        %v2228 = vadd.f32 %v2090, %v2182
        %v2229 = vadd.f32 %v2091, %v2184
        %v2230 = vadd.f32 %v2092, %v2187
        %v2231 = vadd.f32 %v2093, %v2189
        %v2232 = vadd.f32 %v2094, %v2192
        %v2233 = vadd.f32 %v2095, %v2194
        %v2234 = vadd.f32 %v2096, %v2197
        %v2235 = vadd.f32 %v2097, %v2199
        %v2236 = vadd.f32 %v2098, %v2202
        %v2237 = vadd.f32 %v2099, %v2204
        %vm2238 = vcmask 64512
        %v2239 = vsel %vm2238, %v2206, 0.0
        %v2240 = vsel %vm2238, %v2207, 0.0
        %v2241 = vadd.f32 %v2239, %v2240
        %v2242 = vsel %vm2238, %v2208, 0.0
        %v2243 = vadd.f32 %v2241, %v2242
        %v2244 = vsel %vm2238, %v2209, 0.0
        %v2245 = vadd.f32 %v2243, %v2244
        %v2246 = vsel %vm2238, %v2210, 0.0
        %v2247 = vadd.f32 %v2245, %v2246
        %v2248 = vsel %vm2238, %v2211, 0.0
        %v2249 = vadd.f32 %v2247, %v2248
        %v2250 = vsel %vm2238, %v2212, 0.0
        %v2251 = vadd.f32 %v2249, %v2250
        %v2252 = vsel %vm2238, %v2213, 0.0
        %v2253 = vadd.f32 %v2251, %v2252
        %v2254 = vsel %vm2238, %v2214, 0.0
        %v2255 = vadd.f32 %v2253, %v2254
        %v2256 = vsel %vm2238, %v2215, 0.0
        %v2257 = vadd.f32 %v2255, %v2256
        %v2258 = vsel %vm2238, %v2216, 0.0
        %v2259 = vadd.f32 %v2257, %v2258
        %v2260 = vsel %vm2238, %v2217, 0.0
        %v2261 = vadd.f32 %v2259, %v2260
        %v2262 = vsel %vm2238, %v2218, 0.0
        %v2263 = vadd.f32 %v2261, %v2262
        %v2264 = vsel %vm2238, %v2219, 0.0
        %v2265 = vadd.f32 %v2263, %v2264
        %v2266 = vsel %vm2238, %v2220, 0.0
        %v2267 = vadd.f32 %v2265, %v2266
        %v2268 = vsel %vm2238, %v2221, 0.0
        %v2269 = vadd.f32 %v2267, %v2268
        %v2270 = vsel %vm2238, %v2222, 0.0
        %v2271 = vadd.f32 %v2269, %v2270
        %v2272 = vsel %vm2238, %v2223, 0.0
        %v2273 = vadd.f32 %v2271, %v2272
        %v2274 = vsel %vm2238, %v2224, 0.0
        %v2275 = vadd.f32 %v2273, %v2274
        %v2276 = vsel %vm2238, %v2225, 0.0
        %v2277 = vadd.f32 %v2275, %v2276
        %v2278 = vsel %vm2238, %v2226, 0.0
        %v2279 = vadd.f32 %v2277, %v2278
        %v2280 = vsel %vm2238, %v2227, 0.0
        %v2281 = vadd.f32 %v2279, %v2280
        %v2282 = vsel %vm2238, %v2228, 0.0
        %v2283 = vadd.f32 %v2281, %v2282
        %v2284 = vsel %vm2238, %v2229, 0.0
        %v2285 = vadd.f32 %v2283, %v2284
        %v2286 = vsel %vm2238, %v2230, 0.0
        %v2287 = vadd.f32 %v2285, %v2286
        %v2288 = vsel %vm2238, %v2231, 0.0
        %v2289 = vadd.f32 %v2287, %v2288
        %v2290 = vsel %vm2238, %v2232, 0.0
        %v2291 = vadd.f32 %v2289, %v2290
        %v2292 = vsel %vm2238, %v2233, 0.0
        %v2293 = vadd.f32 %v2291, %v2292
        %v2294 = vsel %vm2238, %v2234, 0.0
        %v2295 = vadd.f32 %v2293, %v2294
        %v2296 = vsel %vm2238, %v2235, 0.0
        %v2297 = vadd.f32 %v2295, %v2296
        %v2298 = vsel %vm2238, %v2236, 0.0
        %v2299 = vadd.f32 %v2297, %v2298
        %v2300 = vsel %vm2238, %v2237, 0.0
        %v2301 = vadd.f32 %v2299, %v2300
        %v2302 = vrot.slane %v2301, 4
        %v2303 = vadd.f32 %v2301, %v2302
        %v2304 = vrot.slane %v2303, 2
        %v2305 = vadd.f32 %v2303, %v2304
        %v2306 = vrot.slane %v2305, 1
        %v2307 = vadd.f32 %v2305, %v2306
        %vm2308 = vcmask 57344
        %2309 = vst.msk [vmem:[%s166] sm:$0x1] %vm2308, %v2307
        %v2310 = vmul.f32 %v2206, %v2206
        %v2311 = vmul.f32 %v2207, %v2207
        %v2312 = vmul.f32 %v2208, %v2208
        %v2313 = vmul.f32 %v2209, %v2209
        %v2314 = vmul.f32 %v2210, %v2210
        %v2315 = vmul.f32 %v2211, %v2211
        %v2316 = vmul.f32 %v2212, %v2212
        %v2317 = vmul.f32 %v2213, %v2213
        %v2318 = vmul.f32 %v2214, %v2214
        %v2319 = vmul.f32 %v2215, %v2215
        %v2320 = vmul.f32 %v2216, %v2216
        %v2321 = vmul.f32 %v2217, %v2217
        %v2322 = vmul.f32 %v2218, %v2218
        %v2323 = vmul.f32 %v2219, %v2219
        %v2324 = vmul.f32 %v2220, %v2220
        %v2325 = vmul.f32 %v2221, %v2221
        %v2326 = vmul.f32 %v2222, %v2222
        %v2327 = vmul.f32 %v2223, %v2223
        %v2328 = vmul.f32 %v2224, %v2224
        %v2329 = vmul.f32 %v2225, %v2225
        %v2330 = vmul.f32 %v2226, %v2226
        %v2331 = vmul.f32 %v2227, %v2227
        %v2332 = vmul.f32 %v2228, %v2228
        %v2333 = vmul.f32 %v2229, %v2229
        %v2334 = vmul.f32 %v2230, %v2230
        %v2335 = vmul.f32 %v2231, %v2231
        %v2336 = vmul.f32 %v2232, %v2232
        %v2337 = vmul.f32 %v2233, %v2233
        %v2338 = vmul.f32 %v2234, %v2234
        %v2339 = vmul.f32 %v2235, %v2235
        %v2340 = vmul.f32 %v2236, %v2236
        %v2341 = vmul.f32 %v2237, %v2237
        %v2342 = vsel %vm2238, %v2310, 0.0
        %v2343 = vsel %vm2238, %v2311, 0.0
        %v2344 = vadd.f32 %v2342, %v2343
        %v2345 = vsel %vm2238, %v2312, 0.0
        %v2346 = vadd.f32 %v2344, %v2345
        %v2347 = vsel %vm2238, %v2313, 0.0
        %v2348 = vadd.f32 %v2346, %v2347
        %v2349 = vsel %vm2238, %v2314, 0.0
        %v2350 = vadd.f32 %v2348, %v2349
        %v2351 = vsel %vm2238, %v2315, 0.0
        %v2352 = vadd.f32 %v2350, %v2351
        %v2353 = vsel %vm2238, %v2316, 0.0
        %v2354 = vadd.f32 %v2352, %v2353
        %v2355 = vsel %vm2238, %v2317, 0.0
        %v2356 = vadd.f32 %v2354, %v2355
        %v2357 = vsel %vm2238, %v2318, 0.0
        %v2358 = vadd.f32 %v2356, %v2357
        %v2359 = vsel %vm2238, %v2319, 0.0
        %v2360 = vadd.f32 %v2358, %v2359
        %v2361 = vsel %vm2238, %v2320, 0.0
        %v2362 = vadd.f32 %v2360, %v2361
        %v2363 = vsel %vm2238, %v2321, 0.0
        %v2364 = vadd.f32 %v2362, %v2363
        %v2365 = vsel %vm2238, %v2322, 0.0
        %v2366 = vadd.f32 %v2364, %v2365
        %v2367 = vsel %vm2238, %v2323, 0.0
        %v2368 = vadd.f32 %v2366, %v2367
        %v2369 = vsel %vm2238, %v2324, 0.0
        %v2370 = vadd.f32 %v2368, %v2369
        %v2371 = vsel %vm2238, %v2325, 0.0
        %v2372 = vadd.f32 %v2370, %v2371
        %v2373 = vsel %vm2238, %v2326, 0.0
        %v2374 = vadd.f32 %v2372, %v2373
        %v2375 = vsel %vm2238, %v2327, 0.0
        %v2376 = vadd.f32 %v2374, %v2375
        %v2377 = vsel %vm2238, %v2328, 0.0
        %v2378 = vadd.f32 %v2376, %v2377
        %v2379 = vsel %vm2238, %v2329, 0.0
        %v2380 = vadd.f32 %v2378, %v2379
        %v2381 = vsel %vm2238, %v2330, 0.0
        %v2382 = vadd.f32 %v2380, %v2381
        %v2383 = vsel %vm2238, %v2331, 0.0
        %v2384 = vadd.f32 %v2382, %v2383
        %v2385 = vsel %vm2238, %v2332, 0.0
        %v2386 = vadd.f32 %v2384, %v2385
        %v2387 = vsel %vm2238, %v2333, 0.0
        %v2388 = vadd.f32 %v2386, %v2387
        %v2389 = vsel %vm2238, %v2334, 0.0
        %v2390 = vadd.f32 %v2388, %v2389
        %v2391 = vsel %vm2238, %v2335, 0.0
        %v2392 = vadd.f32 %v2390, %v2391
        %v2393 = vsel %vm2238, %v2336, 0.0
        %v2394 = vadd.f32 %v2392, %v2393
        %v2395 = vsel %vm2238, %v2337, 0.0
        %v2396 = vadd.f32 %v2394, %v2395
        %v2397 = vsel %vm2238, %v2338, 0.0
        %v2398 = vadd.f32 %v2396, %v2397
        %v2399 = vsel %vm2238, %v2339, 0.0
        %v2400 = vadd.f32 %v2398, %v2399
        %v2401 = vsel %vm2238, %v2340, 0.0
        %v2402 = vadd.f32 %v2400, %v2401
        %v2403 = vsel %vm2238, %v2341, 0.0
        %v2404 = vadd.f32 %v2402, %v2403
        %v2405 = vrot.slane %v2404, 4
        %v2406 = vadd.f32 %v2404, %v2405
        %v2407 = vrot.slane %v2406, 2
        %v2408 = vadd.f32 %v2406, %v2407
        %v2409 = vrot.slane %v2408, 1
        %v2410 = vadd.f32 %v2408, %v2409
        %2411 = vst.msk [vmem:[%s172] sm:$0x1] %vm2308, %v2410
        %s2412 = sand.u32 %s76, 1
        %s2413 = scalar_lea.sflag [#allocation3], %s2412
        %s2414 = sand.u32 %s76, 1
        %s2415 = scalar_lea.vmem [#allocation2], %s2414
        %s2416 = sand.u32 %s102, 1
        %s2417 = scalar_lea.sflag [#allocation5], %s2416
        %s2418 = sand.u32 %s102, 1
        %s2419 = scalar_lea.vmem [#allocation4], %s2418
        // Predicated region
        $region29: #{tpu_custom_call.1} parent=27 // pred_check
          %p2420 = pneg %p86
        $region30: #{tpu_custom_call.1} parent=27 // pred_check_branch
          %2422 = sbr.rel (%p2420) target = $region32
        $region31: #{tpu_custom_call.1} parent=27 // pred_region
          %2424 = vsyncadd %s2413, 0
          %s2425 = scalar_lea.hbm %s2, %s21
          %s2427 = sshll.u32 %s2415, 4
          %s2428 = int_to_ptr.vmem [resolvable:$true] %s2427
          %s2429 = sshll.u32 %s2425, 4
          %s2430 = int_to_ptr.hbm [resolvable:$true] %s2429
          %2432 = dma.vmem_to_hbm [thread:$0]  %s2428, 16, %s2430, %s2413
        $region32: #{tpu_custom_call.1} parent=27 // pred_fallthru
          _
        // Predicated region
        $region33: #{tpu_custom_call.1} parent=27 // pred_check
          %p2433 = pneg %p112
        $region34: #{tpu_custom_call.1} parent=27 // pred_check_branch
          %2435 = sbr.rel (%p2433) target = $region36
        $region35: #{tpu_custom_call.1} parent=27 // pred_region
          %2437 = vsyncadd %s2417, 0
          %s2438 = scalar_lea.hbm %s3, %s21
          %s2440 = sshll.u32 %s2419, 4
          %s2441 = int_to_ptr.vmem [resolvable:$true] %s2440
          %s2442 = sshll.u32 %s2438, 4
          %s2443 = int_to_ptr.hbm [resolvable:$true] %s2442
          %2445 = dma.vmem_to_hbm [thread:$0]  %s2441, 16, %s2443, %s2417
        $region36: #{tpu_custom_call.1} parent=27 // pred_fallthru
          _
      $region28: #{tpu_custom_call.1} parent=5 // pred_fallthru
        _
      %p2446 = scmp.le.s32.totalorder 2, %s16
      // Predicated region
      $region37: #{tpu_custom_call.1} parent=5 // pred_check
        %p2447 = pneg %p2446
      $region38: #{tpu_custom_call.1} parent=5 // pred_check_branch
        %2449 = sbr.rel (%p2447) target = $region40
      $region39: #{tpu_custom_call.1} parent=5 // pred_region
        %s2450 = ssub.s32 %s16, 2
        // Predicated region
        $region41: #{tpu_custom_call.1} parent=39 // pred_check
          %p2451 = pneg %p92
        $region42: #{tpu_custom_call.1} parent=39 // pred_check_branch
          %2453 = sbr.rel (%p2451) target = $region44
        $region43: #{tpu_custom_call.1} parent=39 // pred_region
          %s2454 = sand.u32 %s77, 1
          %s2455 = scalar_lea.sflag [#allocation3], %s2454
          %s2456 = sand.u32 %s77, 1
          %s2457 = scalar_lea.vmem [#allocation2], %s2456
          %2459 = dma.done %s2455, 16
        $region44: #{tpu_custom_call.1} parent=39 // pred_fallthru
          _
        // Predicated region
        $region45: #{tpu_custom_call.1} parent=39 // pred_check
          %p2460 = pneg %p118
        $region46: #{tpu_custom_call.1} parent=39 // pred_check_branch
          %2462 = sbr.rel (%p2460) target = $region48
        $region47: #{tpu_custom_call.1} parent=39 // pred_region
          %s2463 = sand.u32 %s103, 1
          %s2464 = scalar_lea.sflag [#allocation5], %s2463
          %s2465 = sand.u32 %s103, 1
          %s2466 = scalar_lea.vmem [#allocation4], %s2465
          %2468 = dma.done %s2464, 16
        $region48: #{tpu_custom_call.1} parent=39 // pred_fallthru
          _
      $region40: #{tpu_custom_call.1} parent=5 // pred_fallthru
        _
    $region6: #{tpu_custom_call.1} parent=1 // loop_footer
      %s20 = sadd.s32 1, %s16
    $region7: #{tpu_custom_call.1} parent=1 // loop_footer_branch
      %15 = sbr.rel target = $region3
    $region8: #{tpu_custom_call.1} parent=1 // loop_exit
      _
    %2469 = vsyncpa [#allocation3], 1
    %s2470 = scalar_lea.sflag [#allocation3], 1
    %2471 = vsyncpa %s2470, 1
    %2472 = vsyncpa [#allocation5], 1
    %s2473 = scalar_lea.sflag [#allocation5], 1
    %2474 = vsyncpa %s2473, 1

</llo_original>
